<compile_context>
chip_gen: v6e
topology: v6e:2x2x1
jax: 0.10.0
libtpu: 0.0.40
codegen_flags: <defaults>
</compile_context>

<pallas_src>
import functools

import jax
import jax.numpy as jnp
from jax.experimental import pallas as pl
from jax.experimental.pallas import tpu as pltpu


def _verify_kernel(x_ref, y_ref, w1_ref, b1_ref, w2d_ref, b2d_ref, t_ref,
                   loss_ref, *, sim_thred, nx, n_total):
    # First Linear, applied once to x rows and once to y rows (W1 read once).
    w1 = w1_ref[...]
    xp = jnp.dot(x_ref[...], w1, preferred_element_type=jnp.float32) + b1_ref[...]  # (Nx, H)
    yp = jnp.dot(y_ref[...], w1, preferred_element_type=jnp.float32)                # (Ny, H)

    w2d = w2d_ref[...]                    # (1, H)  = W2[:, 1] - W2[:, 0]
    b2d = b2d_ref[...]                    # (1, 1)  = b2[1] - b2[0]
    tpos = t_ref[...] > sim_thred         # (Ny, Nx) bool (targets transposed)

    total = jnp.zeros((1, 1), jnp.float32)
    for i in range(nx):                   # small, fully unrolled; VPU/XLU only
        # h_ij = relu((x_i - y_j) @ W1 + b1) = relu(xp_i - yp_j)
        h_i = jnp.maximum(xp[i:i + 1, :] - yp, 0.0)                     # (Ny, H)
        # d_ij = logit1 - logit0 = h_ij @ (W2[:,1]-W2[:,0]) + (b2[1]-b2[0])
        z_i = jnp.sum(h_i * w2d, axis=-1, keepdims=True) + b2d          # (Ny, 1)
        t_i = tpos[:, i:i + 1]                                          # (Ny, 1)
        s = jnp.where(t_i, -z_i, z_i)
        # stable softplus(s) == logsumexp(l0, l1) - l_target
        nll = jnp.maximum(s, 0.0) + jnp.log(1.0 + jnp.exp(-jnp.abs(s)))
        total = total + jnp.sum(nll, axis=0, keepdims=True)

    loss_ref[...] = total * (1.0 / float(n_total))


def verify_forward(x, y, targets, w1, b1, w2, b2, sim_thred=0.5):
    Nx = x.shape[0]
    Ny = y.shape[0]
    F_dim = x.shape[1] * x.shape[2]
    H = w1.shape[1]

    x2 = x.reshape(Nx, F_dim).astype(jnp.float32)
    y2 = y.reshape(Ny, F_dim).astype(jnp.float32)
    t_t = jnp.transpose(targets).astype(jnp.float32)                   # (Ny, Nx)
    b1r = b1.reshape(1, H).astype(jnp.float32)
    w2d = (w2[:, 1] - w2[:, 0]).reshape(1, H).astype(jnp.float32)      # (1, H)
    b2d = (b2[1] - b2[0]).reshape(1, 1).astype(jnp.float32)            # (1, 1)

    kernel = functools.partial(_verify_kernel, sim_thred=float(sim_thred),
                               nx=Nx, n_total=Nx * Ny)

    vmem = pl.BlockSpec(memory_space=pltpu.MemorySpace.VMEM)
    loss = pl.pallas_call(
        kernel,
        out_shape=jax.ShapeDtypeStruct((1, 1), jnp.float32),
        in_specs=[vmem] * 7,
        out_specs=pl.BlockSpec(memory_space=pltpu.MemorySpace.VMEM),
    )(x2, y2, w1.astype(jnp.float32), b1r, w2d, b2d, t_t)
    return loss[0, 0]


def verify_forward_ref(x, y, targets, w1, b1, w2, b2, sim_thred=0.5):
    # Pure-JAX reference mirroring the PyTorch module.
    Nx, Ny = x.shape[0], y.shape[0]
    xf = x.reshape(Nx, 1, -1)
    yf = y.reshape(1, Ny, -1)
    d = xf - yf
    h = jnp.maximum(jnp.dot(d, w1) + b1, 0.0)
    logits = jnp.dot(h, w2) + b2                         # (Nx, Ny, 2)
    t = (targets > sim_thred).astype(jnp.int32)          # (Nx, Ny)
    lse = jax.scipy.special.logsumexp(logits, axis=-1)
    picked = jnp.take_along_axis(logits, t[..., None], axis=-1)[..., 0]
    return jnp.mean(lse - picked)


if __name__ == "__main__":
    key = jax.random.PRNGKey(0)
    kx, ky, kt, kw1, kb1, kw2, kb2 = jax.random.split(key, 7)

    Nx, Ny, S, D = 4, 3, 15, 128       # matches the torch script: x=[4,15,128], y=[3,15,128]
    in_channels = S * D                # 1920
    H, C = 256, 2

    x = jax.random.normal(kx, (Nx, S, D), dtype=jnp.float32)
    y = jax.random.normal(ky, (Ny, S, D), dtype=jnp.float32)
    targets = jax.random.uniform(kt, (Nx, Ny), dtype=jnp.float32)   # similarity scores

    # Deterministic parameter init (shapes from nn.Linear(in_channels,256), nn.Linear(256,2)),
    # weights stored (in_features, out_features), i.e. transposed vs torch nn.Linear.
    w1 = jax.random.normal(kw1, (in_channels, H), dtype=jnp.float32) / (in_channels ** 0.5)
    b1 = jax.random.normal(kb1, (H,), dtype=jnp.float32) * 0.01
    w2 = jax.random.normal(kw2, (H, C), dtype=jnp.float32) / (H ** 0.5)
    b2 = jax.random.normal(kb2, (C,), dtype=jnp.float32) * 0.01

    loss = jax.block_until_ready(verify_forward(x, y, targets, w1, b1, w2, b2))
    ref = jax.block_until_ready(verify_forward_ref(x, y, targets, w1, b1, w2, b2))

    assert jnp.allclose(loss, ref, rtol=1e-4, atol=1e-4), (loss, ref)
    print("KERNEL_OK")
</pallas_src>

<mosaic_0001>
module attributes {stable_mosaic.version = 11 : i64} {
  func.func @_verify_kernel(%arg0: memref<4x1920xf32, #tpu.memory_space<vmem>>, %arg1: memref<3x1920xf32, #tpu.memory_space<vmem>>, %arg2: memref<1920x256xf32, #tpu.memory_space<vmem>>, %arg3: memref<1x256xf32, #tpu.memory_space<vmem>>, %arg4: memref<1x256xf32, #tpu.memory_space<vmem>>, %arg5: memref<1x1xf32, #tpu.memory_space<vmem>>, %arg6: memref<3x4xf32, #tpu.memory_space<vmem>>, %arg7: memref<1x1xf32, #tpu.memory_space<vmem>>) attributes {dimension_semantics = [], scalar_prefetch = 0 : i64, scratch_operands = 0 : i64, tpu.core_type = #tpu.core_type<tc>} {
    %c0 = arith.constant 0 : index
    %c0_0 = arith.constant 0 : index
    %0 = vector.load %arg2[%c0, %c0_0] : memref<1920x256xf32, #tpu.memory_space<vmem>>, vector<1920x256xf32>
    %c0_1 = arith.constant 0 : index
    %c0_2 = arith.constant 0 : index
    %1 = vector.load %arg0[%c0_1, %c0_2] : memref<4x1920xf32, #tpu.memory_space<vmem>>, vector<4x1920xf32>
    %cst = arith.constant dense<0.000000e+00> : vector<4x256xf32>
    %2 = tpu.matmul %1, %0, %cst {dimension_numbers = #tpu.dot_dimension_numbers<[1], [0], [0], [1], [0, 0, 1, 1], [], []>} : vector<4x1920xf32>, vector<1920x256xf32>, vector<4x256xf32> -> vector<4x256xf32>
    %c0_3 = arith.constant 0 : index
    %c0_4 = arith.constant 0 : index
    %3 = vector.load %arg3[%c0_3, %c0_4] : memref<1x256xf32, #tpu.memory_space<vmem>>, vector<1x256xf32>
    %4 = vector.broadcast %3 : vector<1x256xf32> to vector<4x256xf32>
    %5 = arith.addf %2, %4 : vector<4x256xf32>
    %c0_5 = arith.constant 0 : index
    %c0_6 = arith.constant 0 : index
    %6 = vector.load %arg1[%c0_5, %c0_6] : memref<3x1920xf32, #tpu.memory_space<vmem>>, vector<3x1920xf32>
    %cst_7 = arith.constant dense<0.000000e+00> : vector<3x256xf32>
    %7 = tpu.matmul %6, %0, %cst_7 {dimension_numbers = #tpu.dot_dimension_numbers<[1], [0], [0], [1], [0, 0, 1, 1], [], []>} : vector<3x1920xf32>, vector<1920x256xf32>, vector<3x256xf32> -> vector<3x256xf32>
    %c0_8 = arith.constant 0 : index
    %c0_9 = arith.constant 0 : index
    %8 = vector.load %arg4[%c0_8, %c0_9] : memref<1x256xf32, #tpu.memory_space<vmem>>, vector<1x256xf32>
    %c0_10 = arith.constant 0 : index
    %c0_11 = arith.constant 0 : index
    %9 = vector.load %arg5[%c0_10, %c0_11] : memref<1x1xf32, #tpu.memory_space<vmem>>, vector<1x1xf32>
    %c0_12 = arith.constant 0 : index
    %c0_13 = arith.constant 0 : index
    %10 = vector.load %arg6[%c0_12, %c0_13] : memref<3x4xf32, #tpu.memory_space<vmem>>, vector<3x4xf32>
    %cst_14 = arith.constant 5.000000e-01 : f32
    %11 = vector.broadcast %cst_14 : f32 to vector<3x4xf32>
    %12 = arith.cmpf ogt, %10, %11 : vector<3x4xf32>
    %cst_15 = arith.constant 0.000000e+00 : f32
    %13 = vector.broadcast %cst_15 : f32 to vector<1x1xf32>
    %14 = vector.extract_strided_slice %5 {offsets = [0, 0], sizes = [1, 256], strides = [1, 1]} : vector<4x256xf32> to vector<1x256xf32>
    %15 = vector.broadcast %14 : vector<1x256xf32> to vector<3x256xf32>
    %16 = arith.subf %15, %7 : vector<3x256xf32>
    %cst_16 = arith.constant 0.000000e+00 : f32
    %17 = vector.broadcast %cst_16 : f32 to vector<3x256xf32>
    %18 = arith.maximumf %16, %17 : vector<3x256xf32>
    %19 = vector.broadcast %8 : vector<1x256xf32> to vector<3x256xf32>
    %20 = arith.mulf %18, %19 : vector<3x256xf32>
    %cst_17 = arith.constant dense<0.000000e+00> : vector<3xf32>
    %21 = vector.multi_reduction <add>, %20, %cst_17 [1] : vector<3x256xf32> to vector<3xf32>
    %22 = vector.shape_cast %21 : vector<3xf32> to vector<3x1xf32>
    %23 = vector.broadcast %9 : vector<1x1xf32> to vector<3x1xf32>
    %24 = arith.addf %22, %23 : vector<3x1xf32>
    %25 = vector.extract_strided_slice %12 {offsets = [0, 0], sizes = [3, 1], strides = [1, 1]} : vector<3x4xi1> to vector<3x1xi1>
    %cst_18 = arith.constant 0.000000e+00 : f32
    %26 = vector.broadcast %cst_18 : f32 to vector<3x1xf32>
    %27 = arith.subf %26, %24 : vector<3x1xf32>
    %28 = arith.select %25, %27, %24 : vector<3x1xi1>, vector<3x1xf32>
    %cst_19 = arith.constant 0.000000e+00 : f32
    %29 = vector.broadcast %cst_19 : f32 to vector<3x1xf32>
    %30 = arith.maximumf %28, %29 : vector<3x1xf32>
    %31 = math.absf %28 : vector<3x1xf32>
    %cst_20 = arith.constant 0.000000e+00 : f32
    %32 = vector.broadcast %cst_20 : f32 to vector<3x1xf32>
    %33 = arith.subf %32, %31 : vector<3x1xf32>
    %34 = math.exp %33 : vector<3x1xf32>
    %cst_21 = arith.constant 1.000000e+00 : f32
    %35 = vector.broadcast %cst_21 : f32 to vector<3x1xf32>
    %36 = arith.addf %35, %34 : vector<3x1xf32>
    %37 = math.log %36 : vector<3x1xf32>
    %38 = arith.addf %30, %37 : vector<3x1xf32>
    %cst_22 = arith.constant dense<0.000000e+00> : vector<1xf32>
    %39 = vector.multi_reduction <add>, %38, %cst_22 [0] : vector<3x1xf32> to vector<1xf32>
    %40 = vector.shape_cast %39 : vector<1xf32> to vector<1x1xf32>
    %41 = arith.addf %13, %40 : vector<1x1xf32>
    %42 = vector.extract_strided_slice %5 {offsets = [1, 0], sizes = [1, 256], strides = [1, 1]} : vector<4x256xf32> to vector<1x256xf32>
    %43 = vector.broadcast %42 : vector<1x256xf32> to vector<3x256xf32>
    %44 = arith.subf %43, %7 : vector<3x256xf32>
    %cst_23 = arith.constant 0.000000e+00 : f32
    %45 = vector.broadcast %cst_23 : f32 to vector<3x256xf32>
    %46 = arith.maximumf %44, %45 : vector<3x256xf32>
    %47 = vector.broadcast %8 : vector<1x256xf32> to vector<3x256xf32>
    %48 = arith.mulf %46, %47 : vector<3x256xf32>
    %cst_24 = arith.constant dense<0.000000e+00> : vector<3xf32>
    %49 = vector.multi_reduction <add>, %48, %cst_24 [1] : vector<3x256xf32> to vector<3xf32>
    %50 = vector.shape_cast %49 : vector<3xf32> to vector<3x1xf32>
    %51 = vector.broadcast %9 : vector<1x1xf32> to vector<3x1xf32>
    %52 = arith.addf %50, %51 : vector<3x1xf32>
    %53 = vector.extract_strided_slice %12 {offsets = [0, 1], sizes = [3, 1], strides = [1, 1]} : vector<3x4xi1> to vector<3x1xi1>
    %cst_25 = arith.constant 0.000000e+00 : f32
    %54 = vector.broadcast %cst_25 : f32 to vector<3x1xf32>
    %55 = arith.subf %54, %52 : vector<3x1xf32>
    %56 = arith.select %53, %55, %52 : vector<3x1xi1>, vector<3x1xf32>
    %cst_26 = arith.constant 0.000000e+00 : f32
    %57 = vector.broadcast %cst_26 : f32 to vector<3x1xf32>
    %58 = arith.maximumf %56, %57 : vector<3x1xf32>
    %59 = math.absf %56 : vector<3x1xf32>
    %cst_27 = arith.constant 0.000000e+00 : f32
    %60 = vector.broadcast %cst_27 : f32 to vector<3x1xf32>
    %61 = arith.subf %60, %59 : vector<3x1xf32>
    %62 = math.exp %61 : vector<3x1xf32>
    %cst_28 = arith.constant 1.000000e+00 : f32
    %63 = vector.broadcast %cst_28 : f32 to vector<3x1xf32>
    %64 = arith.addf %63, %62 : vector<3x1xf32>
    %65 = math.log %64 : vector<3x1xf32>
    %66 = arith.addf %58, %65 : vector<3x1xf32>
    %cst_29 = arith.constant dense<0.000000e+00> : vector<1xf32>
    %67 = vector.multi_reduction <add>, %66, %cst_29 [0] : vector<3x1xf32> to vector<1xf32>
    %68 = vector.shape_cast %67 : vector<1xf32> to vector<1x1xf32>
    %69 = arith.addf %41, %68 : vector<1x1xf32>
    %70 = vector.extract_strided_slice %5 {offsets = [2, 0], sizes = [1, 256], strides = [1, 1]} : vector<4x256xf32> to vector<1x256xf32>
    %71 = vector.broadcast %70 : vector<1x256xf32> to vector<3x256xf32>
    %72 = arith.subf %71, %7 : vector<3x256xf32>
    %cst_30 = arith.constant 0.000000e+00 : f32
    %73 = vector.broadcast %cst_30 : f32 to vector<3x256xf32>
    %74 = arith.maximumf %72, %73 : vector<3x256xf32>
    %75 = vector.broadcast %8 : vector<1x256xf32> to vector<3x256xf32>
    %76 = arith.mulf %74, %75 : vector<3x256xf32>
    %cst_31 = arith.constant dense<0.000000e+00> : vector<3xf32>
    %77 = vector.multi_reduction <add>, %76, %cst_31 [1] : vector<3x256xf32> to vector<3xf32>
    %78 = vector.shape_cast %77 : vector<3xf32> to vector<3x1xf32>
    %79 = vector.broadcast %9 : vector<1x1xf32> to vector<3x1xf32>
    %80 = arith.addf %78, %79 : vector<3x1xf32>
    %81 = vector.extract_strided_slice %12 {offsets = [0, 2], sizes = [3, 1], strides = [1, 1]} : vector<3x4xi1> to vector<3x1xi1>
    %cst_32 = arith.constant 0.000000e+00 : f32
    %82 = vector.broadcast %cst_32 : f32 to vector<3x1xf32>
    %83 = arith.subf %82, %80 : vector<3x1xf32>
    %84 = arith.select %81, %83, %80 : vector<3x1xi1>, vector<3x1xf32>
    %cst_33 = arith.constant 0.000000e+00 : f32
    %85 = vector.broadcast %cst_33 : f32 to vector<3x1xf32>
    %86 = arith.maximumf %84, %85 : vector<3x1xf32>
    %87 = math.absf %84 : vector<3x1xf32>
    %cst_34 = arith.constant 0.000000e+00 : f32
    %88 = vector.broadcast %cst_34 : f32 to vector<3x1xf32>
    %89 = arith.subf %88, %87 : vector<3x1xf32>
    %90 = math.exp %89 : vector<3x1xf32>
    %cst_35 = arith.constant 1.000000e+00 : f32
    %91 = vector.broadcast %cst_35 : f32 to vector<3x1xf32>
    %92 = arith.addf %91, %90 : vector<3x1xf32>
    %93 = math.log %92 : vector<3x1xf32>
    %94 = arith.addf %86, %93 : vector<3x1xf32>
    %cst_36 = arith.constant dense<0.000000e+00> : vector<1xf32>
    %95 = vector.multi_reduction <add>, %94, %cst_36 [0] : vector<3x1xf32> to vector<1xf32>
    %96 = vector.shape_cast %95 : vector<1xf32> to vector<1x1xf32>
    %97 = arith.addf %69, %96 : vector<1x1xf32>
    %98 = vector.extract_strided_slice %5 {offsets = [3, 0], sizes = [1, 256], strides = [1, 1]} : vector<4x256xf32> to vector<1x256xf32>
    %99 = vector.broadcast %98 : vector<1x256xf32> to vector<3x256xf32>
    %100 = arith.subf %99, %7 : vector<3x256xf32>
    %cst_37 = arith.constant 0.000000e+00 : f32
    %101 = vector.broadcast %cst_37 : f32 to vector<3x256xf32>
    %102 = arith.maximumf %100, %101 : vector<3x256xf32>
    %103 = vector.broadcast %8 : vector<1x256xf32> to vector<3x256xf32>
    %104 = arith.mulf %102, %103 : vector<3x256xf32>
    %cst_38 = arith.constant dense<0.000000e+00> : vector<3xf32>
    %105 = vector.multi_reduction <add>, %104, %cst_38 [1] : vector<3x256xf32> to vector<3xf32>
    %106 = vector.shape_cast %105 : vector<3xf32> to vector<3x1xf32>
    %107 = vector.broadcast %9 : vector<1x1xf32> to vector<3x1xf32>
    %108 = arith.addf %106, %107 : vector<3x1xf32>
    %109 = vector.extract_strided_slice %12 {offsets = [0, 3], sizes = [3, 1], strides = [1, 1]} : vector<3x4xi1> to vector<3x1xi1>
    %cst_39 = arith.constant 0.000000e+00 : f32
    %110 = vector.broadcast %cst_39 : f32 to vector<3x1xf32>
    %111 = arith.subf %110, %108 : vector<3x1xf32>
    %112 = arith.select %109, %111, %108 : vector<3x1xi1>, vector<3x1xf32>
    %cst_40 = arith.constant 0.000000e+00 : f32
    %113 = vector.broadcast %cst_40 : f32 to vector<3x1xf32>
    %114 = arith.maximumf %112, %113 : vector<3x1xf32>
    %115 = math.absf %112 : vector<3x1xf32>
    %cst_41 = arith.constant 0.000000e+00 : f32
    %116 = vector.broadcast %cst_41 : f32 to vector<3x1xf32>
    %117 = arith.subf %116, %115 : vector<3x1xf32>
    %118 = math.exp %117 : vector<3x1xf32>
    %cst_42 = arith.constant 1.000000e+00 : f32
    %119 = vector.broadcast %cst_42 : f32 to vector<3x1xf32>
    %120 = arith.addf %119, %118 : vector<3x1xf32>
    %121 = math.log %120 : vector<3x1xf32>
    %122 = arith.addf %114, %121 : vector<3x1xf32>
    %cst_43 = arith.constant dense<0.000000e+00> : vector<1xf32>
    %123 = vector.multi_reduction <add>, %122, %cst_43 [0] : vector<3x1xf32> to vector<1xf32>
    %124 = vector.shape_cast %123 : vector<1xf32> to vector<1x1xf32>
    %125 = arith.addf %97, %124 : vector<1x1xf32>
    %cst_44 = arith.constant 0.0833333358 : f32
    %126 = vector.broadcast %cst_44 : f32 to vector<1x1xf32>
    %127 = arith.mulf %125, %126 : vector<1x1xf32>
    %c0_45 = arith.constant 0 : index
    %c0_46 = arith.constant 0 : index
    %128 = vector.load %arg7[%c0_45, %c0_46] : memref<1x1xf32, #tpu.memory_space<vmem>>, vector<1x1xf32>
    tpu.vector_store %arg7[%c0_45, %c0_46], %127 {strides = array<i32>} : memref<1x1xf32, #tpu.memory_space<vmem>>, vector<1x1xf32>,
    return
  }
}

</mosaic_0001>

<llo_original>
// kernel: tpu_custom_call.1
$region0: #{tpu_custom_call.1}
  #allocation0 [shape = 'u32[]', space=smem, size = 0x4, offset = 0x4, fixed_abs, tag = 'smem constant byte address 0x4 - core index']
  #allocation1 [shape = 'u32[144,128]{1,0:T(1,128)}', space=vmem, size = 0x12000, scoped, tag = 'internal scratch']
  #allocation2 [shape = 'f32[1,1]{1,0:T(1,128)S(1)}', space=vmem, size = 0x200, scoped, tag = 'scoped memory for tpu_custom_call.1']
  %s0 = inlined_call_operand.hbm [shape: f32[4,1920], index: 0, kind: input, shape index: {}]
  %s1 = inlined_call_operand.hbm [shape: f32[3,1920], index: 1, kind: input, shape index: {}]
  %s2 = inlined_call_operand.hbm [shape: f32[1920,256], index: 2, kind: input, shape index: {}]
  %s3 = inlined_call_operand.hbm [shape: f32[1,256], index: 3, kind: input, shape index: {}]
  %s4 = inlined_call_operand.hbm [shape: f32[1,256], index: 4, kind: input, shape index: {}]
  %s5 = inlined_call_operand.<no memory space> [shape: f32[1,1], index: 5, kind: input, shape index: {}]
  %s6 = inlined_call_operand.hbm [shape: f32[3,4], index: 6, kind: input, shape index: {}]
  %s7 = inlined_call_operand.hbm [shape: f32[1,1], index: 7, kind: output, shape index: {}]
  %s8 = sld [smem:[#allocation0]]
  $region62: #{tpu_custom_call.1} parent=0
    _
  %s10 = ssub.s32 1, %s8
  %s11 = scalar_select 0, %s10, %s8
  %v12 = vstv %s5
  %13 = vst [vmem:[#allocation2] sm:$0x1] %v12
  $region1: #{tpu_custom_call.1} parent=0
    #allocation3 [shape = 'u8[30720]{0}', space=vmem, size = 0x7800, scoped, tag = 'input window, operand 0, single buffered']
    #allocation4 [shape = 's32[1]{0}', space=sflag, size = 0x4, scoped, tag = 'scoped memory for tpu_custom_call.1']
    #allocation5 [shape = 's32[1]{0}', space=sflag, size = 0x4, scoped, tag = 'scoped memory for tpu_custom_call.1']
    #allocation6 [shape = 'u8[30720]{0}', space=vmem, size = 0x7800, scoped, tag = 'input window, operand 1, single buffered']
    #allocation7 [shape = 's32[1]{0}', space=sflag, size = 0x4, scoped, tag = 'scoped memory for tpu_custom_call.1']
    #allocation8 [shape = 'u8[1966080]{0}', space=vmem, size = 0x1e0000, scoped, tag = 'input window, operand 2, single buffered']
    #allocation9 [shape = 'u8[1024]{0}', space=vmem, size = 0x400, scoped, tag = 'input window, operand 3, single buffered']
    #allocation10 [shape = 's32[1]{0}', space=sflag, size = 0x4, scoped, tag = 'scoped memory for tpu_custom_call.1']
    #allocation11 [shape = 'u8[1024]{0}', space=vmem, size = 0x400, scoped, tag = 'input window, operand 4, single buffered']
    #allocation12 [shape = 'u8[2048]{0}', space=vmem, size = 0x800, scoped, tag = 'input window, operand 6, single buffered']
    #allocation13 [shape = 's32[1]{0}', space=sflag, size = 0x4, scoped, tag = 'scoped memory for tpu_custom_call.1']
    #allocation14 [shape = 'u8[512]{0}', space=vmem, size = 0x400, scoped, tag = 'output window, operand 0, single buffered']
    %14 = vsyncpa [#allocation4], 0
    %15 = vsyncpa [#allocation7], 0
    %16 = vsyncpa [#allocation10], 0
    %17 = vsyncpa [#allocation13], 0
    %18 = vsyncpa [#allocation5], 0
    // Predicated region
    $region2: #{tpu_custom_call.1} parent=1 // pred_check
      _
    $region3: #{tpu_custom_call.1} parent=1 // pred_check_branch
      %20 = sbr.rel (0) target = $region5
    $region4: #{tpu_custom_call.1} parent=1 // pred_region
      %s22 = ssub.s32 960, 960
      %23 = vsyncadd [#allocation4], %s22
      %s25 = sshll.u32 [#allocation3], 4
      %s26 = int_to_ptr.vmem [resolvable:$true] %s25
      %28 = dma.hbm_to_vmem [thread:$0]  %s0, 960, %s26, [#allocation4]
    $region5: #{tpu_custom_call.1} parent=1 // pred_fallthru
      _
    // Predicated region
    $region6: #{tpu_custom_call.1} parent=1 // pred_check
      _
    $region7: #{tpu_custom_call.1} parent=1 // pred_check_branch
      %30 = sbr.rel (0) target = $region9
    $region8: #{tpu_custom_call.1} parent=1 // pred_region
      %s32 = ssub.s32 960, 960
      %33 = vsyncadd [#allocation7], %s32
      %s35 = sshll.u32 [#allocation6], 4
      %s36 = int_to_ptr.vmem [resolvable:$true] %s35
      %38 = dma.hbm_to_vmem [thread:$0]  %s1, 960, %s36, [#allocation7]
    $region9: #{tpu_custom_call.1} parent=1 // pred_fallthru
      _
    // Predicated region
    $region10: #{tpu_custom_call.1} parent=1 // pred_check
      _
    $region11: #{tpu_custom_call.1} parent=1 // pred_check_branch
      %40 = sbr.rel (0) target = $region13
    $region12: #{tpu_custom_call.1} parent=1 // pred_region
      %s42 = ssub.s32 61440, 61440
      %43 = vsyncadd [#allocation7], %s42
      %s44 = sshll.u32 [#allocation8], 4
      %s45 = int_to_ptr.vmem [resolvable:$true] %s44
      %50 = dma.hbm_to_vmem [thread:$0]  %s2, 61440, %s45, [#allocation7], 256, 256, 16
    $region13: #{tpu_custom_call.1} parent=1 // pred_fallthru
      _
    // Predicated region
    $region14: #{tpu_custom_call.1} parent=1 // pred_check
      _
    $region15: #{tpu_custom_call.1} parent=1 // pred_check_branch
      %52 = sbr.rel (0) target = $region17
    $region16: #{tpu_custom_call.1} parent=1 // pred_region
      %s54 = ssub.s32 32, 32
      %55 = vsyncadd [#allocation10], %s54
      %s57 = sshll.u32 [#allocation9], 4
      %s58 = int_to_ptr.vmem [resolvable:$true] %s57
      %60 = dma.hbm_to_vmem [thread:$0]  %s3, 32, %s58, [#allocation10]
    $region17: #{tpu_custom_call.1} parent=1 // pred_fallthru
      _
    // Predicated region
    $region18: #{tpu_custom_call.1} parent=1 // pred_check
      _
    $region19: #{tpu_custom_call.1} parent=1 // pred_check_branch
      %62 = sbr.rel (0) target = $region21
    $region20: #{tpu_custom_call.1} parent=1 // pred_region
      %s64 = ssub.s32 32, 32
      %65 = vsyncadd [#allocation10], %s64
      %s67 = sshll.u32 [#allocation11], 4
      %s68 = int_to_ptr.vmem [resolvable:$true] %s67
      %70 = dma.hbm_to_vmem [thread:$0]  %s4, 32, %s68, [#allocation10]
    $region21: #{tpu_custom_call.1} parent=1 // pred_fallthru
      _
    // Predicated region
    $region22: #{tpu_custom_call.1} parent=1 // pred_check
      _
    $region23: #{tpu_custom_call.1} parent=1 // pred_check_branch
      %72 = sbr.rel (0) target = $region25
    $region24: #{tpu_custom_call.1} parent=1 // pred_region
      _
    $region25: #{tpu_custom_call.1} parent=1 // pred_fallthru
      _
    // Predicated region
    $region26: #{tpu_custom_call.1} parent=1 // pred_check
      _
    $region27: #{tpu_custom_call.1} parent=1 // pred_check_branch
      %74 = sbr.rel (0) target = $region29
    $region28: #{tpu_custom_call.1} parent=1 // pred_region
      %s76 = ssub.s32 64, 64
      %77 = vsyncadd [#allocation13], %s76
      %s79 = sshll.u32 [#allocation12], 4
      %s80 = int_to_ptr.vmem [resolvable:$true] %s79
      %82 = dma.hbm_to_vmem [thread:$0]  %s6, 64, %s80, [#allocation13]
    $region29: #{tpu_custom_call.1} parent=1 // pred_fallthru
      _
    // Predicated region
    $region30: #{tpu_custom_call.1} parent=1 // pred_check
      _
    $region31: #{tpu_custom_call.1} parent=1 // pred_check_branch
      %84 = sbr.rel (0) target = $region33
    $region32: #{tpu_custom_call.1} parent=1 // pred_region
      %85 = dma.done [#allocation4], 960
    $region33: #{tpu_custom_call.1} parent=1 // pred_fallthru
      _
    // Predicated region
    $region34: #{tpu_custom_call.1} parent=1 // pred_check
      _
    $region35: #{tpu_custom_call.1} parent=1 // pred_check_branch
      %87 = sbr.rel (0) target = $region37
    $region36: #{tpu_custom_call.1} parent=1 // pred_region
      %88 = dma.done [#allocation7], 960
    $region37: #{tpu_custom_call.1} parent=1 // pred_fallthru
      _
    // Predicated region
    $region38: #{tpu_custom_call.1} parent=1 // pred_check
      _
    $region39: #{tpu_custom_call.1} parent=1 // pred_check_branch
      %90 = sbr.rel (0) target = $region41
    $region40: #{tpu_custom_call.1} parent=1 // pred_region
      %91 = dma.done [#allocation7], 61440
    $region41: #{tpu_custom_call.1} parent=1 // pred_fallthru
      _
    // Predicated region
    $region42: #{tpu_custom_call.1} parent=1 // pred_check
      _
    $region43: #{tpu_custom_call.1} parent=1 // pred_check_branch
      %93 = sbr.rel (0) target = $region45
    $region44: #{tpu_custom_call.1} parent=1 // pred_region
      %94 = dma.done [#allocation10], 32
    $region45: #{tpu_custom_call.1} parent=1 // pred_fallthru
      _
    // Predicated region
    $region46: #{tpu_custom_call.1} parent=1 // pred_check
      _
    $region47: #{tpu_custom_call.1} parent=1 // pred_check_branch
      %96 = sbr.rel (0) target = $region49
    $region48: #{tpu_custom_call.1} parent=1 // pred_region
      %97 = dma.done [#allocation10], 32
    $region49: #{tpu_custom_call.1} parent=1 // pred_fallthru
      _
    // Predicated region
    $region50: #{tpu_custom_call.1} parent=1 // pred_check
      _
    $region51: #{tpu_custom_call.1} parent=1 // pred_check_branch
      %99 = sbr.rel (0) target = $region53
    $region52: #{tpu_custom_call.1} parent=1 // pred_region
      %100 = dma.done [#allocation13], 64
    $region53: #{tpu_custom_call.1} parent=1 // pred_fallthru
      _
    %v101 = vld [vmem:[#allocation8] sm:$0xff]
    %v102 = vld [vmem:[#allocation8 + $0x8] sm:$0xff]
    %v103 = vld [vmem:[#allocation8 + $0x10] sm:$0xff]
    %v104 = vld [vmem:[#allocation8 + $0x18] sm:$0xff]
    %v105 = vld [vmem:[#allocation8 + $0x20] sm:$0xff]
    %v106 = vld [vmem:[#allocation8 + $0x28] sm:$0xff]
    %v107 = vld [vmem:[#allocation8 + $0x30] sm:$0xff]
    %v108 = vld [vmem:[#allocation8 + $0x38] sm:$0xff]
    %v109 = vld [vmem:[#allocation8 + $0x40] sm:$0xff]
    %v110 = vld [vmem:[#allocation8 + $0x48] sm:$0xff]
    %v111 = vld [vmem:[#allocation8 + $0x50] sm:$0xff]
    %v112 = vld [vmem:[#allocation8 + $0x58] sm:$0xff]
    %v113 = vld [vmem:[#allocation8 + $0x60] sm:$0xff]
    %v114 = vld [vmem:[#allocation8 + $0x68] sm:$0xff]
    %v115 = vld [vmem:[#allocation8 + $0x70] sm:$0xff]
    %v116 = vld [vmem:[#allocation8 + $0x78] sm:$0xff]
    %v117 = vld [vmem:[#allocation8 + $0x80] sm:$0xff]
    %v118 = vld [vmem:[#allocation8 + $0x88] sm:$0xff]
    %v119 = vld [vmem:[#allocation8 + $0x90] sm:$0xff]
    %v120 = vld [vmem:[#allocation8 + $0x98] sm:$0xff]
    %v121 = vld [vmem:[#allocation8 + $0xa0] sm:$0xff]
    %v122 = vld [vmem:[#allocation8 + $0xa8] sm:$0xff]
    %v123 = vld [vmem:[#allocation8 + $0xb0] sm:$0xff]
    %v124 = vld [vmem:[#allocation8 + $0xb8] sm:$0xff]
    %v125 = vld [vmem:[#allocation8 + $0xc0] sm:$0xff]
    %v126 = vld [vmem:[#allocation8 + $0xc8] sm:$0xff]
    %v127 = vld [vmem:[#allocation8 + $0xd0] sm:$0xff]
    %v128 = vld [vmem:[#allocation8 + $0xd8] sm:$0xff]
    %v129 = vld [vmem:[#allocation8 + $0xe0] sm:$0xff]
    %v130 = vld [vmem:[#allocation8 + $0xe8] sm:$0xff]
    %v131 = vld [vmem:[#allocation8 + $0xf0] sm:$0xff]
    %v132 = vld [vmem:[#allocation8 + $0xf8] sm:$0xff]
    %v133 = vld [vmem:[#allocation8 + $0x100] sm:$0xff]
    %v134 = vld [vmem:[#allocation8 + $0x108] sm:$0xff]
    %v135 = vld [vmem:[#allocation8 + $0x110] sm:$0xff]
    %v136 = vld [vmem:[#allocation8 + $0x118] sm:$0xff]
    %v137 = vld [vmem:[#allocation8 + $0x120] sm:$0xff]
    %v138 = vld [vmem:[#allocation8 + $0x128] sm:$0xff]
    %v139 = vld [vmem:[#allocation8 + $0x130] sm:$0xff]
    %v140 = vld [vmem:[#allocation8 + $0x138] sm:$0xff]
    %v141 = vld [vmem:[#allocation8 + $0x140] sm:$0xff]
    %v142 = vld [vmem:[#allocation8 + $0x148] sm:$0xff]
    %v143 = vld [vmem:[#allocation8 + $0x150] sm:$0xff]
    %v144 = vld [vmem:[#allocation8 + $0x158] sm:$0xff]
    %v145 = vld [vmem:[#allocation8 + $0x160] sm:$0xff]
    %v146 = vld [vmem:[#allocation8 + $0x168] sm:$0xff]
    %v147 = vld [vmem:[#allocation8 + $0x170] sm:$0xff]
    %v148 = vld [vmem:[#allocation8 + $0x178] sm:$0xff]
    %v149 = vld [vmem:[#allocation8 + $0x180] sm:$0xff]
    %v150 = vld [vmem:[#allocation8 + $0x188] sm:$0xff]
    %v151 = vld [vmem:[#allocation8 + $0x190] sm:$0xff]
    %v152 = vld [vmem:[#allocation8 + $0x198] sm:$0xff]
    %v153 = vld [vmem:[#allocation8 + $0x1a0] sm:$0xff]
    %v154 = vld [vmem:[#allocation8 + $0x1a8] sm:$0xff]
    %v155 = vld [vmem:[#allocation8 + $0x1b0] sm:$0xff]
    %v156 = vld [vmem:[#allocation8 + $0x1b8] sm:$0xff]
    %v157 = vld [vmem:[#allocation8 + $0x1c0] sm:$0xff]
    %v158 = vld [vmem:[#allocation8 + $0x1c8] sm:$0xff]
    %v159 = vld [vmem:[#allocation8 + $0x1d0] sm:$0xff]
    %v160 = vld [vmem:[#allocation8 + $0x1d8] sm:$0xff]
    %v161 = vld [vmem:[#allocation8 + $0x1e0] sm:$0xff]
    %v162 = vld [vmem:[#allocation8 + $0x1e8] sm:$0xff]
    %v163 = vld [vmem:[#allocation8 + $0x1f0] sm:$0xff]
    %v164 = vld [vmem:[#allocation8 + $0x1f8] sm:$0xff]
    %v165 = vld [vmem:[#allocation8 + $0x200] sm:$0xff]
    %v166 = vld [vmem:[#allocation8 + $0x208] sm:$0xff]
    %v167 = vld [vmem:[#allocation8 + $0x210] sm:$0xff]
    %v168 = vld [vmem:[#allocation8 + $0x218] sm:$0xff]
    %v169 = vld [vmem:[#allocation8 + $0x220] sm:$0xff]
    %v170 = vld [vmem:[#allocation8 + $0x228] sm:$0xff]
    %v171 = vld [vmem:[#allocation8 + $0x230] sm:$0xff]
    %v172 = vld [vmem:[#allocation8 + $0x238] sm:$0xff]
    %v173 = vld [vmem:[#allocation8 + $0x240] sm:$0xff]
    %v174 = vld [vmem:[#allocation8 + $0x248] sm:$0xff]
    %v175 = vld [vmem:[#allocation8 + $0x250] sm:$0xff]
    %v176 = vld [vmem:[#allocation8 + $0x258] sm:$0xff]
    %v177 = vld [vmem:[#allocation8 + $0x260] sm:$0xff]
    %v178 = vld [vmem:[#allocation8 + $0x268] sm:$0xff]
    %v179 = vld [vmem:[#allocation8 + $0x270] sm:$0xff]
    %v180 = vld [vmem:[#allocation8 + $0x278] sm:$0xff]
    %v181 = vld [vmem:[#allocation8 + $0x280] sm:$0xff]
    %v182 = vld [vmem:[#allocation8 + $0x288] sm:$0xff]
    %v183 = vld [vmem:[#allocation8 + $0x290] sm:$0xff]
    %v184 = vld [vmem:[#allocation8 + $0x298] sm:$0xff]
    %v185 = vld [vmem:[#allocation8 + $0x2a0] sm:$0xff]
    %v186 = vld [vmem:[#allocation8 + $0x2a8] sm:$0xff]
    %v187 = vld [vmem:[#allocation8 + $0x2b0] sm:$0xff]
    %v188 = vld [vmem:[#allocation8 + $0x2b8] sm:$0xff]
    %v189 = vld [vmem:[#allocation8 + $0x2c0] sm:$0xff]
    %v190 = vld [vmem:[#allocation8 + $0x2c8] sm:$0xff]
    %v191 = vld [vmem:[#allocation8 + $0x2d0] sm:$0xff]
    %v192 = vld [vmem:[#allocation8 + $0x2d8] sm:$0xff]
    %v193 = vld [vmem:[#allocation8 + $0x2e0] sm:$0xff]
    %v194 = vld [vmem:[#allocation8 + $0x2e8] sm:$0xff]
    %v195 = vld [vmem:[#allocation8 + $0x2f0] sm:$0xff]
    %v196 = vld [vmem:[#allocation8 + $0x2f8] sm:$0xff]
    %v197 = vld [vmem:[#allocation8 + $0x300] sm:$0xff]
    %v198 = vld [vmem:[#allocation8 + $0x308] sm:$0xff]
    %v199 = vld [vmem:[#allocation8 + $0x310] sm:$0xff]
    %v200 = vld [vmem:[#allocation8 + $0x318] sm:$0xff]
    %v201 = vld [vmem:[#allocation8 + $0x320] sm:$0xff]
    %v202 = vld [vmem:[#allocation8 + $0x328] sm:$0xff]
    %v203 = vld [vmem:[#allocation8 + $0x330] sm:$0xff]
    %v204 = vld [vmem:[#allocation8 + $0x338] sm:$0xff]
    %v205 = vld [vmem:[#allocation8 + $0x340] sm:$0xff]
    %v206 = vld [vmem:[#allocation8 + $0x348] sm:$0xff]
    %v207 = vld [vmem:[#allocation8 + $0x350] sm:$0xff]
    %v208 = vld [vmem:[#allocation8 + $0x358] sm:$0xff]
    %v209 = vld [vmem:[#allocation8 + $0x360] sm:$0xff]
    %v210 = vld [vmem:[#allocation8 + $0x368] sm:$0xff]
    %v211 = vld [vmem:[#allocation8 + $0x370] sm:$0xff]
    %v212 = vld [vmem:[#allocation8 + $0x378] sm:$0xff]
    %v213 = vld [vmem:[#allocation8 + $0x380] sm:$0xff]
    %v214 = vld [vmem:[#allocation8 + $0x388] sm:$0xff]
    %v215 = vld [vmem:[#allocation8 + $0x390] sm:$0xff]
    %v216 = vld [vmem:[#allocation8 + $0x398] sm:$0xff]
    %v217 = vld [vmem:[#allocation8 + $0x3a0] sm:$0xff]
    %v218 = vld [vmem:[#allocation8 + $0x3a8] sm:$0xff]
    %v219 = vld [vmem:[#allocation8 + $0x3b0] sm:$0xff]
    %v220 = vld [vmem:[#allocation8 + $0x3b8] sm:$0xff]
    %v221 = vld [vmem:[#allocation8 + $0x3c0] sm:$0xff]
    %v222 = vld [vmem:[#allocation8 + $0x3c8] sm:$0xff]
    %v223 = vld [vmem:[#allocation8 + $0x3d0] sm:$0xff]
    %v224 = vld [vmem:[#allocation8 + $0x3d8] sm:$0xff]
    %v225 = vld [vmem:[#allocation8 + $0x3e0] sm:$0xff]
    %v226 = vld [vmem:[#allocation8 + $0x3e8] sm:$0xff]
    %v227 = vld [vmem:[#allocation8 + $0x3f0] sm:$0xff]
    %v228 = vld [vmem:[#allocation8 + $0x3f8] sm:$0xff]
    %v229 = vld [vmem:[#allocation8 + $0x400] sm:$0xff]
    %v230 = vld [vmem:[#allocation8 + $0x408] sm:$0xff]
    %v231 = vld [vmem:[#allocation8 + $0x410] sm:$0xff]
    %v232 = vld [vmem:[#allocation8 + $0x418] sm:$0xff]
    %v233 = vld [vmem:[#allocation8 + $0x420] sm:$0xff]
    %v234 = vld [vmem:[#allocation8 + $0x428] sm:$0xff]
    %v235 = vld [vmem:[#allocation8 + $0x430] sm:$0xff]
    %v236 = vld [vmem:[#allocation8 + $0x438] sm:$0xff]
    %v237 = vld [vmem:[#allocation8 + $0x440] sm:$0xff]
    %v238 = vld [vmem:[#allocation8 + $0x448] sm:$0xff]
    %v239 = vld [vmem:[#allocation8 + $0x450] sm:$0xff]
    %v240 = vld [vmem:[#allocation8 + $0x458] sm:$0xff]
    %v241 = vld [vmem:[#allocation8 + $0x460] sm:$0xff]
    %v242 = vld [vmem:[#allocation8 + $0x468] sm:$0xff]
    %v243 = vld [vmem:[#allocation8 + $0x470] sm:$0xff]
    %v244 = vld [vmem:[#allocation8 + $0x478] sm:$0xff]
    %v245 = vld [vmem:[#allocation8 + $0x480] sm:$0xff]
    %v246 = vld [vmem:[#allocation8 + $0x488] sm:$0xff]
    %v247 = vld [vmem:[#allocation8 + $0x490] sm:$0xff]
    %v248 = vld [vmem:[#allocation8 + $0x498] sm:$0xff]
    %v249 = vld [vmem:[#allocation8 + $0x4a0] sm:$0xff]
    %v250 = vld [vmem:[#allocation8 + $0x4a8] sm:$0xff]
    %v251 = vld [vmem:[#allocation8 + $0x4b0] sm:$0xff]
    %v252 = vld [vmem:[#allocation8 + $0x4b8] sm:$0xff]
    %v253 = vld [vmem:[#allocation8 + $0x4c0] sm:$0xff]
    %v254 = vld [vmem:[#allocation8 + $0x4c8] sm:$0xff]
    %v255 = vld [vmem:[#allocation8 + $0x4d0] sm:$0xff]
    %v256 = vld [vmem:[#allocation8 + $0x4d8] sm:$0xff]
    %v257 = vld [vmem:[#allocation8 + $0x4e0] sm:$0xff]
    %v258 = vld [vmem:[#allocation8 + $0x4e8] sm:$0xff]
    %v259 = vld [vmem:[#allocation8 + $0x4f0] sm:$0xff]
    %v260 = vld [vmem:[#allocation8 + $0x4f8] sm:$0xff]
    %v261 = vld [vmem:[#allocation8 + $0x500] sm:$0xff]
    %v262 = vld [vmem:[#allocation8 + $0x508] sm:$0xff]
    %v263 = vld [vmem:[#allocation8 + $0x510] sm:$0xff]
    %v264 = vld [vmem:[#allocation8 + $0x518] sm:$0xff]
    %v265 = vld [vmem:[#allocation8 + $0x520] sm:$0xff]
    %v266 = vld [vmem:[#allocation8 + $0x528] sm:$0xff]
    %v267 = vld [vmem:[#allocation8 + $0x530] sm:$0xff]
    %v268 = vld [vmem:[#allocation8 + $0x538] sm:$0xff]
    %v269 = vld [vmem:[#allocation8 + $0x540] sm:$0xff]
    %v270 = vld [vmem:[#allocation8 + $0x548] sm:$0xff]
    %v271 = vld [vmem:[#allocation8 + $0x550] sm:$0xff]
    %v272 = vld [vmem:[#allocation8 + $0x558] sm:$0xff]
    %v273 = vld [vmem:[#allocation8 + $0x560] sm:$0xff]
    %v274 = vld [vmem:[#allocation8 + $0x568] sm:$0xff]
    %v275 = vld [vmem:[#allocation8 + $0x570] sm:$0xff]
    %v276 = vld [vmem:[#allocation8 + $0x578] sm:$0xff]
    %v277 = vld [vmem:[#allocation8 + $0x580] sm:$0xff]
    %v278 = vld [vmem:[#allocation8 + $0x588] sm:$0xff]
    %v279 = vld [vmem:[#allocation8 + $0x590] sm:$0xff]
    %v280 = vld [vmem:[#allocation8 + $0x598] sm:$0xff]
    %v281 = vld [vmem:[#allocation8 + $0x5a0] sm:$0xff]
    %v282 = vld [vmem:[#allocation8 + $0x5a8] sm:$0xff]
    %v283 = vld [vmem:[#allocation8 + $0x5b0] sm:$0xff]
    %v284 = vld [vmem:[#allocation8 + $0x5b8] sm:$0xff]
    %v285 = vld [vmem:[#allocation8 + $0x5c0] sm:$0xff]
    %v286 = vld [vmem:[#allocation8 + $0x5c8] sm:$0xff]
    %v287 = vld [vmem:[#allocation8 + $0x5d0] sm:$0xff]
    %v288 = vld [vmem:[#allocation8 + $0x5d8] sm:$0xff]
    %v289 = vld [vmem:[#allocation8 + $0x5e0] sm:$0xff]
    %v290 = vld [vmem:[#allocation8 + $0x5e8] sm:$0xff]
    %v291 = vld [vmem:[#allocation8 + $0x5f0] sm:$0xff]
    %v292 = vld [vmem:[#allocation8 + $0x5f8] sm:$0xff]
    %v293 = vld [vmem:[#allocation8 + $0x600] sm:$0xff]
    %v294 = vld [vmem:[#allocation8 + $0x608] sm:$0xff]
    %v295 = vld [vmem:[#allocation8 + $0x610] sm:$0xff]
    %v296 = vld [vmem:[#allocation8 + $0x618] sm:$0xff]
    %v297 = vld [vmem:[#allocation8 + $0x620] sm:$0xff]
    %v298 = vld [vmem:[#allocation8 + $0x628] sm:$0xff]
    %v299 = vld [vmem:[#allocation8 + $0x630] sm:$0xff]
    %v300 = vld [vmem:[#allocation8 + $0x638] sm:$0xff]
    %v301 = vld [vmem:[#allocation8 + $0x640] sm:$0xff]
    %v302 = vld [vmem:[#allocation8 + $0x648] sm:$0xff]
    %v303 = vld [vmem:[#allocation8 + $0x650] sm:$0xff]
    %v304 = vld [vmem:[#allocation8 + $0x658] sm:$0xff]
    %v305 = vld [vmem:[#allocation8 + $0x660] sm:$0xff]
    %v306 = vld [vmem:[#allocation8 + $0x668] sm:$0xff]
    %v307 = vld [vmem:[#allocation8 + $0x670] sm:$0xff]
    %v308 = vld [vmem:[#allocation8 + $0x678] sm:$0xff]
    %v309 = vld [vmem:[#allocation8 + $0x680] sm:$0xff]
    %v310 = vld [vmem:[#allocation8 + $0x688] sm:$0xff]
    %v311 = vld [vmem:[#allocation8 + $0x690] sm:$0xff]
    %v312 = vld [vmem:[#allocation8 + $0x698] sm:$0xff]
    %v313 = vld [vmem:[#allocation8 + $0x6a0] sm:$0xff]
    %v314 = vld [vmem:[#allocation8 + $0x6a8] sm:$0xff]
    %v315 = vld [vmem:[#allocation8 + $0x6b0] sm:$0xff]
    %v316 = vld [vmem:[#allocation8 + $0x6b8] sm:$0xff]
    %v317 = vld [vmem:[#allocation8 + $0x6c0] sm:$0xff]
    %v318 = vld [vmem:[#allocation8 + $0x6c8] sm:$0xff]
    %v319 = vld [vmem:[#allocation8 + $0x6d0] sm:$0xff]
    %v320 = vld [vmem:[#allocation8 + $0x6d8] sm:$0xff]
    %v321 = vld [vmem:[#allocation8 + $0x6e0] sm:$0xff]
    %v322 = vld [vmem:[#allocation8 + $0x6e8] sm:$0xff]
    %v323 = vld [vmem:[#allocation8 + $0x6f0] sm:$0xff]
    %v324 = vld [vmem:[#allocation8 + $0x6f8] sm:$0xff]
    %v325 = vld [vmem:[#allocation8 + $0x700] sm:$0xff]
    %v326 = vld [vmem:[#allocation8 + $0x708] sm:$0xff]
    %v327 = vld [vmem:[#allocation8 + $0x710] sm:$0xff]
    %v328 = vld [vmem:[#allocation8 + $0x718] sm:$0xff]
    %v329 = vld [vmem:[#allocation8 + $0x720] sm:$0xff]
    %v330 = vld [vmem:[#allocation8 + $0x728] sm:$0xff]
    %v331 = vld [vmem:[#allocation8 + $0x730] sm:$0xff]
    %v332 = vld [vmem:[#allocation8 + $0x738] sm:$0xff]
    %v333 = vld [vmem:[#allocation8 + $0x740] sm:$0xff]
    %v334 = vld [vmem:[#allocation8 + $0x748] sm:$0xff]
    %v335 = vld [vmem:[#allocation8 + $0x750] sm:$0xff]
    %v336 = vld [vmem:[#allocation8 + $0x758] sm:$0xff]
    %v337 = vld [vmem:[#allocation8 + $0x760] sm:$0xff]
    %v338 = vld [vmem:[#allocation8 + $0x768] sm:$0xff]
    %v339 = vld [vmem:[#allocation8 + $0x770] sm:$0xff]
    %v340 = vld [vmem:[#allocation8 + $0x778] sm:$0xff]
    %v341 = vld [vmem:[#allocation8 + $0x780] sm:$0xff]
    %v342 = vld [vmem:[#allocation8 + $0x788] sm:$0xff]
    %v343 = vld [vmem:[#allocation8 + $0x790] sm:$0xff]
    %v344 = vld [vmem:[#allocation8 + $0x798] sm:$0xff]
    %v345 = vld [vmem:[#allocation8 + $0x7a0] sm:$0xff]
    %v346 = vld [vmem:[#allocation8 + $0x7a8] sm:$0xff]
    %v347 = vld [vmem:[#allocation8 + $0x7b0] sm:$0xff]
    %v348 = vld [vmem:[#allocation8 + $0x7b8] sm:$0xff]
    %v349 = vld [vmem:[#allocation8 + $0x7c0] sm:$0xff]
    %v350 = vld [vmem:[#allocation8 + $0x7c8] sm:$0xff]
    %v351 = vld [vmem:[#allocation8 + $0x7d0] sm:$0xff]
    %v352 = vld [vmem:[#allocation8 + $0x7d8] sm:$0xff]
    %v353 = vld [vmem:[#allocation8 + $0x7e0] sm:$0xff]
    %v354 = vld [vmem:[#allocation8 + $0x7e8] sm:$0xff]
    %v355 = vld [vmem:[#allocation8 + $0x7f0] sm:$0xff]
    %v356 = vld [vmem:[#allocation8 + $0x7f8] sm:$0xff]
    %v357 = vld [vmem:[#allocation8 + $0x800] sm:$0xff]
    %v358 = vld [vmem:[#allocation8 + $0x808] sm:$0xff]
    %v359 = vld [vmem:[#allocation8 + $0x810] sm:$0xff]
    %v360 = vld [vmem:[#allocation8 + $0x818] sm:$0xff]
    %v361 = vld [vmem:[#allocation8 + $0x820] sm:$0xff]
    %v362 = vld [vmem:[#allocation8 + $0x828] sm:$0xff]
    %v363 = vld [vmem:[#allocation8 + $0x830] sm:$0xff]
    %v364 = vld [vmem:[#allocation8 + $0x838] sm:$0xff]
    %v365 = vld [vmem:[#allocation8 + $0x840] sm:$0xff]
    %v366 = vld [vmem:[#allocation8 + $0x848] sm:$0xff]
    %v367 = vld [vmem:[#allocation8 + $0x850] sm:$0xff]
    %v368 = vld [vmem:[#allocation8 + $0x858] sm:$0xff]
    %v369 = vld [vmem:[#allocation8 + $0x860] sm:$0xff]
    %v370 = vld [vmem:[#allocation8 + $0x868] sm:$0xff]
    %v371 = vld [vmem:[#allocation8 + $0x870] sm:$0xff]
    %v372 = vld [vmem:[#allocation8 + $0x878] sm:$0xff]
    %v373 = vld [vmem:[#allocation8 + $0x880] sm:$0xff]
    %v374 = vld [vmem:[#allocation8 + $0x888] sm:$0xff]
    %v375 = vld [vmem:[#allocation8 + $0x890] sm:$0xff]
    %v376 = vld [vmem:[#allocation8 + $0x898] sm:$0xff]
    %v377 = vld [vmem:[#allocation8 + $0x8a0] sm:$0xff]
    %v378 = vld [vmem:[#allocation8 + $0x8a8] sm:$0xff]
    %v379 = vld [vmem:[#allocation8 + $0x8b0] sm:$0xff]
    %v380 = vld [vmem:[#allocation8 + $0x8b8] sm:$0xff]
    %v381 = vld [vmem:[#allocation8 + $0x8c0] sm:$0xff]
    %v382 = vld [vmem:[#allocation8 + $0x8c8] sm:$0xff]
    %v383 = vld [vmem:[#allocation8 + $0x8d0] sm:$0xff]
    %v384 = vld [vmem:[#allocation8 + $0x8d8] sm:$0xff]
    %v385 = vld [vmem:[#allocation8 + $0x8e0] sm:$0xff]
    %v386 = vld [vmem:[#allocation8 + $0x8e8] sm:$0xff]
    %v387 = vld [vmem:[#allocation8 + $0x8f0] sm:$0xff]
    %v388 = vld [vmem:[#allocation8 + $0x8f8] sm:$0xff]
    %v389 = vld [vmem:[#allocation8 + $0x900] sm:$0xff]
    %v390 = vld [vmem:[#allocation8 + $0x908] sm:$0xff]
    %v391 = vld [vmem:[#allocation8 + $0x910] sm:$0xff]
    %v392 = vld [vmem:[#allocation8 + $0x918] sm:$0xff]
    %v393 = vld [vmem:[#allocation8 + $0x920] sm:$0xff]
    %v394 = vld [vmem:[#allocation8 + $0x928] sm:$0xff]
    %v395 = vld [vmem:[#allocation8 + $0x930] sm:$0xff]
    %v396 = vld [vmem:[#allocation8 + $0x938] sm:$0xff]
    %v397 = vld [vmem:[#allocation8 + $0x940] sm:$0xff]
    %v398 = vld [vmem:[#allocation8 + $0x948] sm:$0xff]
    %v399 = vld [vmem:[#allocation8 + $0x950] sm:$0xff]
    %v400 = vld [vmem:[#allocation8 + $0x958] sm:$0xff]
    %v401 = vld [vmem:[#allocation8 + $0x960] sm:$0xff]
    %v402 = vld [vmem:[#allocation8 + $0x968] sm:$0xff]
    %v403 = vld [vmem:[#allocation8 + $0x970] sm:$0xff]
    %v404 = vld [vmem:[#allocation8 + $0x978] sm:$0xff]
    %v405 = vld [vmem:[#allocation8 + $0x980] sm:$0xff]
    %v406 = vld [vmem:[#allocation8 + $0x988] sm:$0xff]
    %v407 = vld [vmem:[#allocation8 + $0x990] sm:$0xff]
    %v408 = vld [vmem:[#allocation8 + $0x998] sm:$0xff]
    %v409 = vld [vmem:[#allocation8 + $0x9a0] sm:$0xff]
    %v410 = vld [vmem:[#allocation8 + $0x9a8] sm:$0xff]
    %v411 = vld [vmem:[#allocation8 + $0x9b0] sm:$0xff]
    %v412 = vld [vmem:[#allocation8 + $0x9b8] sm:$0xff]
    %v413 = vld [vmem:[#allocation8 + $0x9c0] sm:$0xff]
    %v414 = vld [vmem:[#allocation8 + $0x9c8] sm:$0xff]
    %v415 = vld [vmem:[#allocation8 + $0x9d0] sm:$0xff]
    %v416 = vld [vmem:[#allocation8 + $0x9d8] sm:$0xff]
    %v417 = vld [vmem:[#allocation8 + $0x9e0] sm:$0xff]
    %v418 = vld [vmem:[#allocation8 + $0x9e8] sm:$0xff]
    %v419 = vld [vmem:[#allocation8 + $0x9f0] sm:$0xff]
    %v420 = vld [vmem:[#allocation8 + $0x9f8] sm:$0xff]
    %v421 = vld [vmem:[#allocation8 + $0xa00] sm:$0xff]
    %v422 = vld [vmem:[#allocation8 + $0xa08] sm:$0xff]
    %v423 = vld [vmem:[#allocation8 + $0xa10] sm:$0xff]
    %v424 = vld [vmem:[#allocation8 + $0xa18] sm:$0xff]
    %v425 = vld [vmem:[#allocation8 + $0xa20] sm:$0xff]
    %v426 = vld [vmem:[#allocation8 + $0xa28] sm:$0xff]
    %v427 = vld [vmem:[#allocation8 + $0xa30] sm:$0xff]
    %v428 = vld [vmem:[#allocation8 + $0xa38] sm:$0xff]
    %v429 = vld [vmem:[#allocation8 + $0xa40] sm:$0xff]
    %v430 = vld [vmem:[#allocation8 + $0xa48] sm:$0xff]
    %v431 = vld [vmem:[#allocation8 + $0xa50] sm:$0xff]
    %v432 = vld [vmem:[#allocation8 + $0xa58] sm:$0xff]
    %v433 = vld [vmem:[#allocation8 + $0xa60] sm:$0xff]
    %v434 = vld [vmem:[#allocation8 + $0xa68] sm:$0xff]
    %v435 = vld [vmem:[#allocation8 + $0xa70] sm:$0xff]
    %v436 = vld [vmem:[#allocation8 + $0xa78] sm:$0xff]
    %v437 = vld [vmem:[#allocation8 + $0xa80] sm:$0xff]
    %v438 = vld [vmem:[#allocation8 + $0xa88] sm:$0xff]
    %v439 = vld [vmem:[#allocation8 + $0xa90] sm:$0xff]
    %v440 = vld [vmem:[#allocation8 + $0xa98] sm:$0xff]
    %v441 = vld [vmem:[#allocation8 + $0xaa0] sm:$0xff]
    %v442 = vld [vmem:[#allocation8 + $0xaa8] sm:$0xff]
    %v443 = vld [vmem:[#allocation8 + $0xab0] sm:$0xff]
    %v444 = vld [vmem:[#allocation8 + $0xab8] sm:$0xff]
    %v445 = vld [vmem:[#allocation8 + $0xac0] sm:$0xff]
    %v446 = vld [vmem:[#allocation8 + $0xac8] sm:$0xff]
    %v447 = vld [vmem:[#allocation8 + $0xad0] sm:$0xff]
    %v448 = vld [vmem:[#allocation8 + $0xad8] sm:$0xff]
    %v449 = vld [vmem:[#allocation8 + $0xae0] sm:$0xff]
    %v450 = vld [vmem:[#allocation8 + $0xae8] sm:$0xff]
    %v451 = vld [vmem:[#allocation8 + $0xaf0] sm:$0xff]
    %v452 = vld [vmem:[#allocation8 + $0xaf8] sm:$0xff]
    %v453 = vld [vmem:[#allocation8 + $0xb00] sm:$0xff]
    %v454 = vld [vmem:[#allocation8 + $0xb08] sm:$0xff]
    %v455 = vld [vmem:[#allocation8 + $0xb10] sm:$0xff]
    %v456 = vld [vmem:[#allocation8 + $0xb18] sm:$0xff]
    %v457 = vld [vmem:[#allocation8 + $0xb20] sm:$0xff]
    %v458 = vld [vmem:[#allocation8 + $0xb28] sm:$0xff]
    %v459 = vld [vmem:[#allocation8 + $0xb30] sm:$0xff]
    %v460 = vld [vmem:[#allocation8 + $0xb38] sm:$0xff]
    %v461 = vld [vmem:[#allocation8 + $0xb40] sm:$0xff]
    %v462 = vld [vmem:[#allocation8 + $0xb48] sm:$0xff]
    %v463 = vld [vmem:[#allocation8 + $0xb50] sm:$0xff]
    %v464 = vld [vmem:[#allocation8 + $0xb58] sm:$0xff]
    %v465 = vld [vmem:[#allocation8 + $0xb60] sm:$0xff]
    %v466 = vld [vmem:[#allocation8 + $0xb68] sm:$0xff]
    %v467 = vld [vmem:[#allocation8 + $0xb70] sm:$0xff]
    %v468 = vld [vmem:[#allocation8 + $0xb78] sm:$0xff]
    %v469 = vld [vmem:[#allocation8 + $0xb80] sm:$0xff]
    %v470 = vld [vmem:[#allocation8 + $0xb88] sm:$0xff]
    %v471 = vld [vmem:[#allocation8 + $0xb90] sm:$0xff]
    %v472 = vld [vmem:[#allocation8 + $0xb98] sm:$0xff]
    %v473 = vld [vmem:[#allocation8 + $0xba0] sm:$0xff]
    %v474 = vld [vmem:[#allocation8 + $0xba8] sm:$0xff]
    %v475 = vld [vmem:[#allocation8 + $0xbb0] sm:$0xff]
    %v476 = vld [vmem:[#allocation8 + $0xbb8] sm:$0xff]
    %v477 = vld [vmem:[#allocation8 + $0xbc0] sm:$0xff]
    %v478 = vld [vmem:[#allocation8 + $0xbc8] sm:$0xff]
    %v479 = vld [vmem:[#allocation8 + $0xbd0] sm:$0xff]
    %v480 = vld [vmem:[#allocation8 + $0xbd8] sm:$0xff]
    %v481 = vld [vmem:[#allocation8 + $0xbe0] sm:$0xff]
    %v482 = vld [vmem:[#allocation8 + $0xbe8] sm:$0xff]
    %v483 = vld [vmem:[#allocation8 + $0xbf0] sm:$0xff]
    %v484 = vld [vmem:[#allocation8 + $0xbf8] sm:$0xff]
    %v485 = vld [vmem:[#allocation8 + $0xc00] sm:$0xff]
    %v486 = vld [vmem:[#allocation8 + $0xc08] sm:$0xff]
    %v487 = vld [vmem:[#allocation8 + $0xc10] sm:$0xff]
    %v488 = vld [vmem:[#allocation8 + $0xc18] sm:$0xff]
    %v489 = vld [vmem:[#allocation8 + $0xc20] sm:$0xff]
    %v490 = vld [vmem:[#allocation8 + $0xc28] sm:$0xff]
    %v491 = vld [vmem:[#allocation8 + $0xc30] sm:$0xff]
    %v492 = vld [vmem:[#allocation8 + $0xc38] sm:$0xff]
    %v493 = vld [vmem:[#allocation8 + $0xc40] sm:$0xff]
    %v494 = vld [vmem:[#allocation8 + $0xc48] sm:$0xff]
    %v495 = vld [vmem:[#allocation8 + $0xc50] sm:$0xff]
    %v496 = vld [vmem:[#allocation8 + $0xc58] sm:$0xff]
    %v497 = vld [vmem:[#allocation8 + $0xc60] sm:$0xff]
    %v498 = vld [vmem:[#allocation8 + $0xc68] sm:$0xff]
    %v499 = vld [vmem:[#allocation8 + $0xc70] sm:$0xff]
    %v500 = vld [vmem:[#allocation8 + $0xc78] sm:$0xff]
    %v501 = vld [vmem:[#allocation8 + $0xc80] sm:$0xff]
    %v502 = vld [vmem:[#allocation8 + $0xc88] sm:$0xff]
    %v503 = vld [vmem:[#allocation8 + $0xc90] sm:$0xff]
    %v504 = vld [vmem:[#allocation8 + $0xc98] sm:$0xff]
    %v505 = vld [vmem:[#allocation8 + $0xca0] sm:$0xff]
    %v506 = vld [vmem:[#allocation8 + $0xca8] sm:$0xff]
    %v507 = vld [vmem:[#allocation8 + $0xcb0] sm:$0xff]
    %v508 = vld [vmem:[#allocation8 + $0xcb8] sm:$0xff]
    %v509 = vld [vmem:[#allocation8 + $0xcc0] sm:$0xff]
    %v510 = vld [vmem:[#allocation8 + $0xcc8] sm:$0xff]
    %v511 = vld [vmem:[#allocation8 + $0xcd0] sm:$0xff]
    %v512 = vld [vmem:[#allocation8 + $0xcd8] sm:$0xff]
    %v513 = vld [vmem:[#allocation8 + $0xce0] sm:$0xff]
    %v514 = vld [vmem:[#allocation8 + $0xce8] sm:$0xff]
    %v515 = vld [vmem:[#allocation8 + $0xcf0] sm:$0xff]
    %v516 = vld [vmem:[#allocation8 + $0xcf8] sm:$0xff]
    %v517 = vld [vmem:[#allocation8 + $0xd00] sm:$0xff]
    %v518 = vld [vmem:[#allocation8 + $0xd08] sm:$0xff]
    %v519 = vld [vmem:[#allocation8 + $0xd10] sm:$0xff]
    %v520 = vld [vmem:[#allocation8 + $0xd18] sm:$0xff]
    %v521 = vld [vmem:[#allocation8 + $0xd20] sm:$0xff]
    %v522 = vld [vmem:[#allocation8 + $0xd28] sm:$0xff]
    %v523 = vld [vmem:[#allocation8 + $0xd30] sm:$0xff]
    %v524 = vld [vmem:[#allocation8 + $0xd38] sm:$0xff]
    %v525 = vld [vmem:[#allocation8 + $0xd40] sm:$0xff]
    %v526 = vld [vmem:[#allocation8 + $0xd48] sm:$0xff]
    %v527 = vld [vmem:[#allocation8 + $0xd50] sm:$0xff]
    %v528 = vld [vmem:[#allocation8 + $0xd58] sm:$0xff]
    %v529 = vld [vmem:[#allocation8 + $0xd60] sm:$0xff]
    %v530 = vld [vmem:[#allocation8 + $0xd68] sm:$0xff]
    %v531 = vld [vmem:[#allocation8 + $0xd70] sm:$0xff]
    %v532 = vld [vmem:[#allocation8 + $0xd78] sm:$0xff]
    %v533 = vld [vmem:[#allocation8 + $0xd80] sm:$0xff]
    %v534 = vld [vmem:[#allocation8 + $0xd88] sm:$0xff]
    %v535 = vld [vmem:[#allocation8 + $0xd90] sm:$0xff]
    %v536 = vld [vmem:[#allocation8 + $0xd98] sm:$0xff]
    %v537 = vld [vmem:[#allocation8 + $0xda0] sm:$0xff]
    %v538 = vld [vmem:[#allocation8 + $0xda8] sm:$0xff]
    %v539 = vld [vmem:[#allocation8 + $0xdb0] sm:$0xff]
    %v540 = vld [vmem:[#allocation8 + $0xdb8] sm:$0xff]
    %v541 = vld [vmem:[#allocation8 + $0xdc0] sm:$0xff]
    %v542 = vld [vmem:[#allocation8 + $0xdc8] sm:$0xff]
    %v543 = vld [vmem:[#allocation8 + $0xdd0] sm:$0xff]
    %v544 = vld [vmem:[#allocation8 + $0xdd8] sm:$0xff]
    %v545 = vld [vmem:[#allocation8 + $0xde0] sm:$0xff]
    %v546 = vld [vmem:[#allocation8 + $0xde8] sm:$0xff]
    %v547 = vld [vmem:[#allocation8 + $0xdf0] sm:$0xff]
    %v548 = vld [vmem:[#allocation8 + $0xdf8] sm:$0xff]
    %v549 = vld [vmem:[#allocation8 + $0xe00] sm:$0xff]
    %v550 = vld [vmem:[#allocation8 + $0xe08] sm:$0xff]
    %v551 = vld [vmem:[#allocation8 + $0xe10] sm:$0xff]
    %v552 = vld [vmem:[#allocation8 + $0xe18] sm:$0xff]
    %v553 = vld [vmem:[#allocation8 + $0xe20] sm:$0xff]
    %v554 = vld [vmem:[#allocation8 + $0xe28] sm:$0xff]
    %v555 = vld [vmem:[#allocation8 + $0xe30] sm:$0xff]
    %v556 = vld [vmem:[#allocation8 + $0xe38] sm:$0xff]
    %v557 = vld [vmem:[#allocation8 + $0xe40] sm:$0xff]
    %v558 = vld [vmem:[#allocation8 + $0xe48] sm:$0xff]
    %v559 = vld [vmem:[#allocation8 + $0xe50] sm:$0xff]
    %v560 = vld [vmem:[#allocation8 + $0xe58] sm:$0xff]
    %v561 = vld [vmem:[#allocation8 + $0xe60] sm:$0xff]
    %v562 = vld [vmem:[#allocation8 + $0xe68] sm:$0xff]
    %v563 = vld [vmem:[#allocation8 + $0xe70] sm:$0xff]
    %v564 = vld [vmem:[#allocation8 + $0xe78] sm:$0xff]
    %v565 = vld [vmem:[#allocation8 + $0xe80] sm:$0xff]
    %v566 = vld [vmem:[#allocation8 + $0xe88] sm:$0xff]
    %v567 = vld [vmem:[#allocation8 + $0xe90] sm:$0xff]
    %v568 = vld [vmem:[#allocation8 + $0xe98] sm:$0xff]
    %v569 = vld [vmem:[#allocation8 + $0xea0] sm:$0xff]
    %v570 = vld [vmem:[#allocation8 + $0xea8] sm:$0xff]
    %v571 = vld [vmem:[#allocation8 + $0xeb0] sm:$0xff]
    %v572 = vld [vmem:[#allocation8 + $0xeb8] sm:$0xff]
    %v573 = vld [vmem:[#allocation8 + $0xec0] sm:$0xff]
    %v574 = vld [vmem:[#allocation8 + $0xec8] sm:$0xff]
    %v575 = vld [vmem:[#allocation8 + $0xed0] sm:$0xff]
    %v576 = vld [vmem:[#allocation8 + $0xed8] sm:$0xff]
    %v577 = vld [vmem:[#allocation8 + $0xee0] sm:$0xff]
    %v578 = vld [vmem:[#allocation8 + $0xee8] sm:$0xff]
    %v579 = vld [vmem:[#allocation8 + $0xef0] sm:$0xff]
    %v580 = vld [vmem:[#allocation8 + $0xef8] sm:$0xff]
    %v581 = vld [vmem:[#allocation3] sm:$0xff]
    %v582 = vld [vmem:[#allocation3 + $0x8] sm:$0xff]
    %v583 = vld [vmem:[#allocation3 + $0x10] sm:$0xff]
    %v584 = vld [vmem:[#allocation3 + $0x18] sm:$0xff]
    %v585 = vld [vmem:[#allocation3 + $0x20] sm:$0xff]
    %v586 = vld [vmem:[#allocation3 + $0x28] sm:$0xff]
    %v587 = vld [vmem:[#allocation3 + $0x30] sm:$0xff]
    %v588 = vld [vmem:[#allocation3 + $0x38] sm:$0xf]
    %v589 = vld [vmem:[#allocation9] sm:$0x3]
    %v591 = vlaneseq
    %v592 = vshrl.u32 %v591, 7
    %v593 = vsub.s32 0, %v592
    %v594 = vrot.slane %v589, %v593
    %v595 = vlaneseq
    %v596 = vshrl.u32 %v595, 7
    %v597 = vsub.s32 1, %v596
    %v598 = vrot.slane %v589, %v597
    %v608 = vcombine.high %v581, %v581
    %v609 = vcombine.high %v582, %v582
    %v610 = vcombine.high %v583, %v583
    %v611 = vcombine.high %v584, %v584
    %v612 = vcombine.high %v585, %v585
    %v613 = vcombine.high %v586, %v586
    %v614 = vcombine.high %v587, %v587
    %622 = vmatprep.subr.mxu0 %v132
    %623 = vmatpush1.msra.mxu0 %v131
    %624 = vmatprep.subr.mxu0 %v130
    %625 = vmatpush1.msra.mxu0 %v129
    %626 = vmatprep.subr.mxu0 %v128
    %627 = vmatpush1.msra.mxu0 %v127
    %628 = vmatprep.subr.mxu0 %v126
    %629 = vmatpush1.msra.mxu0 %v125
    %630 = vmatprep.subr.mxu0 %v124
    %631 = vmatpush1.msra.mxu0 %v123
    %632 = vmatprep.subr.mxu0 %v122
    %633 = vmatpush1.msra.mxu0 %v121
    %634 = vmatprep.subr.mxu0 %v120
    %635 = vmatpush1.msra.mxu0 %v119
    %636 = vmatprep.subr.mxu0 %v118
    %637 = vmatpush1.msra.mxu0 %v117
    %638 = vmatprep.subr.mxu0 %v116
    %639 = vmatpush1.msra.mxu0 %v115
    %640 = vmatprep.subr.mxu0 %v114
    %641 = vmatpush1.msra.mxu0 %v113
    %642 = vmatprep.subr.mxu0 %v112
    %643 = vmatpush1.msra.mxu0 %v111
    %644 = vmatprep.subr.mxu0 %v110
    %645 = vmatpush1.msra.mxu0 %v109
    %646 = vmatprep.subr.mxu0 %v108
    %647 = vmatpush1.msra.mxu0 %v107
    %648 = vmatprep.subr.mxu0 %v106
    %649 = vmatpush1.msra.mxu0 %v105
    %650 = vmatprep.subr.mxu0 %v104
    %651 = vmatpush1.msra.mxu0 %v103
    %652 = vmatprep.subr.mxu0 %v102
    %653 = vmatpush1.msra.mxu0 %v101
    %654 = vmatprep.subr.mxu0 %v164
    %655 = vmatpush2.msra.mxu0 %v163
    %656 = vmatprep.subr.mxu0 %v162
    %657 = vmatpush2.msra.mxu0 %v161
    %658 = vmatprep.subr.mxu0 %v160
    %659 = vmatpush2.msra.mxu0 %v159
    %660 = vmatprep.subr.mxu0 %v158
    %661 = vmatpush2.msra.mxu0 %v157
    %662 = vmatprep.subr.mxu0 %v156
    %663 = vmatpush2.msra.mxu0 %v155
    %664 = vmatprep.subr.mxu0 %v154
    %665 = vmatpush2.msra.mxu0 %v153
    %666 = vmatprep.subr.mxu0 %v152
    %667 = vmatpush2.msra.mxu0 %v151
    %668 = vmatprep.subr.mxu0 %v150
    %669 = vmatpush2.msra.mxu0 %v149
    %670 = vmatprep.subr.mxu0 %v148
    %671 = vmatpush2.msra.mxu0 %v147
    %672 = vmatprep.subr.mxu0 %v146
    %673 = vmatpush2.msra.mxu0 %v145
    %674 = vmatprep.subr.mxu0 %v144
    %675 = vmatpush2.msra.mxu0 %v143
    %676 = vmatprep.subr.mxu0 %v142
    %677 = vmatpush2.msra.mxu0 %v141
    %678 = vmatprep.subr.mxu0 %v140
    %679 = vmatpush2.msra.mxu0 %v139
    %680 = vmatprep.subr.mxu0 %v138
    %681 = vmatpush2.msra.mxu0 %v137
    %682 = vmatprep.subr.mxu0 %v136
    %683 = vmatpush2.msra.mxu0 %v135
    %684 = vmatprep.subr.mxu0 %v134
    %685 = vmatpush2.msra.mxu0 %v133
    %686 = vmatprep.mubr.f32.mxu0 %v608
    %687 = vmatmul.mubr.f32.gmra.mxu0 %v581
    %v688 = vpop.f32.mrf.mxu0
    %v689 = vadd.f32 %v594, %v688
    %v690 = vpop.f32.mrf.mxu0
    %v691 = vadd.f32 %v598, %v690
    %692 = vdwg.mxu0
    %693 = vmatprep.subr.mxu0 %v196
    %694 = vmatpush1.msra.mxu0 %v195
    %695 = vmatprep.subr.mxu0 %v194
    %696 = vmatpush1.msra.mxu0 %v193
    %697 = vmatprep.subr.mxu0 %v192
    %698 = vmatpush1.msra.mxu0 %v191
    %699 = vmatprep.subr.mxu0 %v190
    %700 = vmatpush1.msra.mxu0 %v189
    %701 = vmatprep.subr.mxu0 %v188
    %702 = vmatpush1.msra.mxu0 %v187
    %703 = vmatprep.subr.mxu0 %v186
    %704 = vmatpush1.msra.mxu0 %v185
    %705 = vmatprep.subr.mxu0 %v184
    %706 = vmatpush1.msra.mxu0 %v183
    %707 = vmatprep.subr.mxu0 %v182
    %708 = vmatpush1.msra.mxu0 %v181
    %709 = vmatprep.subr.mxu0 %v180
    %710 = vmatpush1.msra.mxu0 %v179
    %711 = vmatprep.subr.mxu0 %v178
    %712 = vmatpush1.msra.mxu0 %v177
    %713 = vmatprep.subr.mxu0 %v176
    %714 = vmatpush1.msra.mxu0 %v175
    %715 = vmatprep.subr.mxu0 %v174
    %716 = vmatpush1.msra.mxu0 %v173
    %717 = vmatprep.subr.mxu0 %v172
    %718 = vmatpush1.msra.mxu0 %v171
    %719 = vmatprep.subr.mxu0 %v170
    %720 = vmatpush1.msra.mxu0 %v169
    %721 = vmatprep.subr.mxu0 %v168
    %722 = vmatpush1.msra.mxu0 %v167
    %723 = vmatprep.subr.mxu0 %v166
    %724 = vmatpush1.msra.mxu0 %v165
    %725 = vmatprep.subr.mxu0 %v228
    %726 = vmatpush2.msra.mxu0 %v227
    %727 = vmatprep.subr.mxu0 %v226
    %728 = vmatpush2.msra.mxu0 %v225
    %729 = vmatprep.subr.mxu0 %v224
    %730 = vmatpush2.msra.mxu0 %v223
    %731 = vmatprep.subr.mxu0 %v222
    %732 = vmatpush2.msra.mxu0 %v221
    %733 = vmatprep.subr.mxu0 %v220
    %734 = vmatpush2.msra.mxu0 %v219
    %735 = vmatprep.subr.mxu0 %v218
    %736 = vmatpush2.msra.mxu0 %v217
    %737 = vmatprep.subr.mxu0 %v216
    %738 = vmatpush2.msra.mxu0 %v215
    %739 = vmatprep.subr.mxu0 %v214
    %740 = vmatpush2.msra.mxu0 %v213
    %741 = vmatprep.subr.mxu0 %v212
    %742 = vmatpush2.msra.mxu0 %v211
    %743 = vmatprep.subr.mxu0 %v210
    %744 = vmatpush2.msra.mxu0 %v209
    %745 = vmatprep.subr.mxu0 %v208
    %746 = vmatpush2.msra.mxu0 %v207
    %747 = vmatprep.subr.mxu0 %v206
    %748 = vmatpush2.msra.mxu0 %v205
    %749 = vmatprep.subr.mxu0 %v204
    %750 = vmatpush2.msra.mxu0 %v203
    %751 = vmatprep.subr.mxu0 %v202
    %752 = vmatpush2.msra.mxu0 %v201
    %753 = vmatprep.subr.mxu0 %v200
    %754 = vmatpush2.msra.mxu0 %v199
    %755 = vmatprep.subr.mxu0 %v198
    %756 = vmatpush2.msra.mxu0 %v197
    %757 = vmatprep.mubr.f32.mxu0 %v609
    %758 = vmatmul.mubr.f32.gmra.mxu0 %v582
    %v759 = vpop.f32.mrf.mxu0
    %v760 = vadd.f32 %v689, %v759
    %v761 = vpop.f32.mrf.mxu0
    %v762 = vadd.f32 %v691, %v761
    %763 = vdwg.mxu0
    %764 = vmatprep.subr.mxu0 %v260
    %765 = vmatpush1.msra.mxu0 %v259
    %766 = vmatprep.subr.mxu0 %v258
    %767 = vmatpush1.msra.mxu0 %v257
    %768 = vmatprep.subr.mxu0 %v256
    %769 = vmatpush1.msra.mxu0 %v255
    %770 = vmatprep.subr.mxu0 %v254
    %771 = vmatpush1.msra.mxu0 %v253
    %772 = vmatprep.subr.mxu0 %v252
    %773 = vmatpush1.msra.mxu0 %v251
    %774 = vmatprep.subr.mxu0 %v250
    %775 = vmatpush1.msra.mxu0 %v249
    %776 = vmatprep.subr.mxu0 %v248
    %777 = vmatpush1.msra.mxu0 %v247
    %778 = vmatprep.subr.mxu0 %v246
    %779 = vmatpush1.msra.mxu0 %v245
    %780 = vmatprep.subr.mxu0 %v244
    %781 = vmatpush1.msra.mxu0 %v243
    %782 = vmatprep.subr.mxu0 %v242
    %783 = vmatpush1.msra.mxu0 %v241
    %784 = vmatprep.subr.mxu0 %v240
    %785 = vmatpush1.msra.mxu0 %v239
    %786 = vmatprep.subr.mxu0 %v238
    %787 = vmatpush1.msra.mxu0 %v237
    %788 = vmatprep.subr.mxu0 %v236
    %789 = vmatpush1.msra.mxu0 %v235
    %790 = vmatprep.subr.mxu0 %v234
    %791 = vmatpush1.msra.mxu0 %v233
    %792 = vmatprep.subr.mxu0 %v232
    %793 = vmatpush1.msra.mxu0 %v231
    %794 = vmatprep.subr.mxu0 %v230
    %795 = vmatpush1.msra.mxu0 %v229
    %796 = vmatprep.subr.mxu0 %v292
    %797 = vmatpush2.msra.mxu0 %v291
    %798 = vmatprep.subr.mxu0 %v290
    %799 = vmatpush2.msra.mxu0 %v289
    %800 = vmatprep.subr.mxu0 %v288
    %801 = vmatpush2.msra.mxu0 %v287
    %802 = vmatprep.subr.mxu0 %v286
    %803 = vmatpush2.msra.mxu0 %v285
    %804 = vmatprep.subr.mxu0 %v284
    %805 = vmatpush2.msra.mxu0 %v283
    %806 = vmatprep.subr.mxu0 %v282
    %807 = vmatpush2.msra.mxu0 %v281
    %808 = vmatprep.subr.mxu0 %v280
    %809 = vmatpush2.msra.mxu0 %v279
    %810 = vmatprep.subr.mxu0 %v278
    %811 = vmatpush2.msra.mxu0 %v277
    %812 = vmatprep.subr.mxu0 %v276
    %813 = vmatpush2.msra.mxu0 %v275
    %814 = vmatprep.subr.mxu0 %v274
    %815 = vmatpush2.msra.mxu0 %v273
    %816 = vmatprep.subr.mxu0 %v272
    %817 = vmatpush2.msra.mxu0 %v271
    %818 = vmatprep.subr.mxu0 %v270
    %819 = vmatpush2.msra.mxu0 %v269
    %820 = vmatprep.subr.mxu0 %v268
    %821 = vmatpush2.msra.mxu0 %v267
    %822 = vmatprep.subr.mxu0 %v266
    %823 = vmatpush2.msra.mxu0 %v265
    %824 = vmatprep.subr.mxu0 %v264
    %825 = vmatpush2.msra.mxu0 %v263
    %826 = vmatprep.subr.mxu0 %v262
    %827 = vmatpush2.msra.mxu0 %v261
    %828 = vmatprep.mubr.f32.mxu0 %v610
    %829 = vmatmul.mubr.f32.gmra.mxu0 %v583
    %v830 = vpop.f32.mrf.mxu0
    %v831 = vadd.f32 %v760, %v830
    %v832 = vpop.f32.mrf.mxu0
    %v833 = vadd.f32 %v762, %v832
    %834 = vdwg.mxu0
    %835 = vmatprep.subr.mxu0 %v324
    %836 = vmatpush1.msra.mxu0 %v323
    %837 = vmatprep.subr.mxu0 %v322
    %838 = vmatpush1.msra.mxu0 %v321
    %839 = vmatprep.subr.mxu0 %v320
    %840 = vmatpush1.msra.mxu0 %v319
    %841 = vmatprep.subr.mxu0 %v318
    %842 = vmatpush1.msra.mxu0 %v317
    %843 = vmatprep.subr.mxu0 %v316
    %844 = vmatpush1.msra.mxu0 %v315
    %845 = vmatprep.subr.mxu0 %v314
    %846 = vmatpush1.msra.mxu0 %v313
    %847 = vmatprep.subr.mxu0 %v312
    %848 = vmatpush1.msra.mxu0 %v311
    %849 = vmatprep.subr.mxu0 %v310
    %850 = vmatpush1.msra.mxu0 %v309
    %851 = vmatprep.subr.mxu0 %v308
    %852 = vmatpush1.msra.mxu0 %v307
    %853 = vmatprep.subr.mxu0 %v306
    %854 = vmatpush1.msra.mxu0 %v305
    %855 = vmatprep.subr.mxu0 %v304
    %856 = vmatpush1.msra.mxu0 %v303
    %857 = vmatprep.subr.mxu0 %v302
    %858 = vmatpush1.msra.mxu0 %v301
    %859 = vmatprep.subr.mxu0 %v300
    %860 = vmatpush1.msra.mxu0 %v299
    %861 = vmatprep.subr.mxu0 %v298
    %862 = vmatpush1.msra.mxu0 %v297
    %863 = vmatprep.subr.mxu0 %v296
    %864 = vmatpush1.msra.mxu0 %v295
    %865 = vmatprep.subr.mxu0 %v294
    %866 = vmatpush1.msra.mxu0 %v293
    %867 = vmatprep.subr.mxu0 %v356
    %868 = vmatpush2.msra.mxu0 %v355
    %869 = vmatprep.subr.mxu0 %v354
    %870 = vmatpush2.msra.mxu0 %v353
    %871 = vmatprep.subr.mxu0 %v352
    %872 = vmatpush2.msra.mxu0 %v351
    %873 = vmatprep.subr.mxu0 %v350
    %874 = vmatpush2.msra.mxu0 %v349
    %875 = vmatprep.subr.mxu0 %v348
    %876 = vmatpush2.msra.mxu0 %v347
    %877 = vmatprep.subr.mxu0 %v346
    %878 = vmatpush2.msra.mxu0 %v345
    %879 = vmatprep.subr.mxu0 %v344
    %880 = vmatpush2.msra.mxu0 %v343
    %881 = vmatprep.subr.mxu0 %v342
    %882 = vmatpush2.msra.mxu0 %v341
    %883 = vmatprep.subr.mxu0 %v340
    %884 = vmatpush2.msra.mxu0 %v339
    %885 = vmatprep.subr.mxu0 %v338
    %886 = vmatpush2.msra.mxu0 %v337
    %887 = vmatprep.subr.mxu0 %v336
    %888 = vmatpush2.msra.mxu0 %v335
    %889 = vmatprep.subr.mxu0 %v334
    %890 = vmatpush2.msra.mxu0 %v333
    %891 = vmatprep.subr.mxu0 %v332
    %892 = vmatpush2.msra.mxu0 %v331
    %893 = vmatprep.subr.mxu0 %v330
    %894 = vmatpush2.msra.mxu0 %v329
    %895 = vmatprep.subr.mxu0 %v328
    %896 = vmatpush2.msra.mxu0 %v327
    %897 = vmatprep.subr.mxu0 %v326
    %898 = vmatpush2.msra.mxu0 %v325
    %899 = vmatprep.mubr.f32.mxu0 %v611
    %900 = vmatmul.mubr.f32.gmra.mxu0 %v584
    %v901 = vpop.f32.mrf.mxu0
    %v902 = vadd.f32 %v831, %v901
    %v903 = vpop.f32.mrf.mxu0
    %v904 = vadd.f32 %v833, %v903
    %905 = vdwg.mxu0
    %906 = vmatprep.subr.mxu0 %v388
    %907 = vmatpush1.msra.mxu0 %v387
    %908 = vmatprep.subr.mxu0 %v386
    %909 = vmatpush1.msra.mxu0 %v385
    %910 = vmatprep.subr.mxu0 %v384
    %911 = vmatpush1.msra.mxu0 %v383
    %912 = vmatprep.subr.mxu0 %v382
    %913 = vmatpush1.msra.mxu0 %v381
    %914 = vmatprep.subr.mxu0 %v380
    %915 = vmatpush1.msra.mxu0 %v379
    %916 = vmatprep.subr.mxu0 %v378
    %917 = vmatpush1.msra.mxu0 %v377
    %918 = vmatprep.subr.mxu0 %v376
    %919 = vmatpush1.msra.mxu0 %v375
    %920 = vmatprep.subr.mxu0 %v374
    %921 = vmatpush1.msra.mxu0 %v373
    %922 = vmatprep.subr.mxu0 %v372
    %923 = vmatpush1.msra.mxu0 %v371
    %924 = vmatprep.subr.mxu0 %v370
    %925 = vmatpush1.msra.mxu0 %v369
    %926 = vmatprep.subr.mxu0 %v368
    %927 = vmatpush1.msra.mxu0 %v367
    %928 = vmatprep.subr.mxu0 %v366
    %929 = vmatpush1.msra.mxu0 %v365
    %930 = vmatprep.subr.mxu0 %v364
    %931 = vmatpush1.msra.mxu0 %v363
    %932 = vmatprep.subr.mxu0 %v362
    %933 = vmatpush1.msra.mxu0 %v361
    %934 = vmatprep.subr.mxu0 %v360
    %935 = vmatpush1.msra.mxu0 %v359
    %936 = vmatprep.subr.mxu0 %v358
    %937 = vmatpush1.msra.mxu0 %v357
    %938 = vmatprep.subr.mxu0 %v420
    %939 = vmatpush2.msra.mxu0 %v419
    %940 = vmatprep.subr.mxu0 %v418
    %941 = vmatpush2.msra.mxu0 %v417
    %942 = vmatprep.subr.mxu0 %v416
    %943 = vmatpush2.msra.mxu0 %v415
    %944 = vmatprep.subr.mxu0 %v414
    %945 = vmatpush2.msra.mxu0 %v413
    %946 = vmatprep.subr.mxu0 %v412
    %947 = vmatpush2.msra.mxu0 %v411
    %948 = vmatprep.subr.mxu0 %v410
    %949 = vmatpush2.msra.mxu0 %v409
    %950 = vmatprep.subr.mxu0 %v408
    %951 = vmatpush2.msra.mxu0 %v407
    %952 = vmatprep.subr.mxu0 %v406
    %953 = vmatpush2.msra.mxu0 %v405
    %954 = vmatprep.subr.mxu0 %v404
    %955 = vmatpush2.msra.mxu0 %v403
    %956 = vmatprep.subr.mxu0 %v402
    %957 = vmatpush2.msra.mxu0 %v401
    %958 = vmatprep.subr.mxu0 %v400
    %959 = vmatpush2.msra.mxu0 %v399
    %960 = vmatprep.subr.mxu0 %v398
    %961 = vmatpush2.msra.mxu0 %v397
    %962 = vmatprep.subr.mxu0 %v396
    %963 = vmatpush2.msra.mxu0 %v395
    %964 = vmatprep.subr.mxu0 %v394
    %965 = vmatpush2.msra.mxu0 %v393
    %966 = vmatprep.subr.mxu0 %v392
    %967 = vmatpush2.msra.mxu0 %v391
    %968 = vmatprep.subr.mxu0 %v390
    %969 = vmatpush2.msra.mxu0 %v389
    %970 = vmatprep.mubr.f32.mxu0 %v612
    %971 = vmatmul.mubr.f32.gmra.mxu0 %v585
    %v972 = vpop.f32.mrf.mxu0
    %v973 = vadd.f32 %v902, %v972
    %v974 = vpop.f32.mrf.mxu0
    %v975 = vadd.f32 %v904, %v974
    %976 = vdwg.mxu0
    %977 = vmatprep.subr.mxu0 %v452
    %978 = vmatpush1.msra.mxu0 %v451
    %979 = vmatprep.subr.mxu0 %v450
    %980 = vmatpush1.msra.mxu0 %v449
    %981 = vmatprep.subr.mxu0 %v448
    %982 = vmatpush1.msra.mxu0 %v447
    %983 = vmatprep.subr.mxu0 %v446
    %984 = vmatpush1.msra.mxu0 %v445
    %985 = vmatprep.subr.mxu0 %v444
    %986 = vmatpush1.msra.mxu0 %v443
    %987 = vmatprep.subr.mxu0 %v442
    %988 = vmatpush1.msra.mxu0 %v441
    %989 = vmatprep.subr.mxu0 %v440
    %990 = vmatpush1.msra.mxu0 %v439
    %991 = vmatprep.subr.mxu0 %v438
    %992 = vmatpush1.msra.mxu0 %v437
    %993 = vmatprep.subr.mxu0 %v436
    %994 = vmatpush1.msra.mxu0 %v435
    %995 = vmatprep.subr.mxu0 %v434
    %996 = vmatpush1.msra.mxu0 %v433
    %997 = vmatprep.subr.mxu0 %v432
    %998 = vmatpush1.msra.mxu0 %v431
    %999 = vmatprep.subr.mxu0 %v430
    %1000 = vmatpush1.msra.mxu0 %v429
    %1001 = vmatprep.subr.mxu0 %v428
    %1002 = vmatpush1.msra.mxu0 %v427
    %1003 = vmatprep.subr.mxu0 %v426
    %1004 = vmatpush1.msra.mxu0 %v425
    %1005 = vmatprep.subr.mxu0 %v424
    %1006 = vmatpush1.msra.mxu0 %v423
    %1007 = vmatprep.subr.mxu0 %v422
    %1008 = vmatpush1.msra.mxu0 %v421
    %1009 = vmatprep.subr.mxu0 %v484
    %1010 = vmatpush2.msra.mxu0 %v483
    %1011 = vmatprep.subr.mxu0 %v482
    %1012 = vmatpush2.msra.mxu0 %v481
    %1013 = vmatprep.subr.mxu0 %v480
    %1014 = vmatpush2.msra.mxu0 %v479
    %1015 = vmatprep.subr.mxu0 %v478
    %1016 = vmatpush2.msra.mxu0 %v477
    %1017 = vmatprep.subr.mxu0 %v476
    %1018 = vmatpush2.msra.mxu0 %v475
    %1019 = vmatprep.subr.mxu0 %v474
    %1020 = vmatpush2.msra.mxu0 %v473
    %1021 = vmatprep.subr.mxu0 %v472
    %1022 = vmatpush2.msra.mxu0 %v471
    %1023 = vmatprep.subr.mxu0 %v470
    %1024 = vmatpush2.msra.mxu0 %v469
    %1025 = vmatprep.subr.mxu0 %v468
    %1026 = vmatpush2.msra.mxu0 %v467
    %1027 = vmatprep.subr.mxu0 %v466
    %1028 = vmatpush2.msra.mxu0 %v465
    %1029 = vmatprep.subr.mxu0 %v464
    %1030 = vmatpush2.msra.mxu0 %v463
    %1031 = vmatprep.subr.mxu0 %v462
    %1032 = vmatpush2.msra.mxu0 %v461
    %1033 = vmatprep.subr.mxu0 %v460
    %1034 = vmatpush2.msra.mxu0 %v459
    %1035 = vmatprep.subr.mxu0 %v458
    %1036 = vmatpush2.msra.mxu0 %v457
    %1037 = vmatprep.subr.mxu0 %v456
    %1038 = vmatpush2.msra.mxu0 %v455
    %1039 = vmatprep.subr.mxu0 %v454
    %1040 = vmatpush2.msra.mxu0 %v453
    %1041 = vmatprep.mubr.f32.mxu0 %v613
    %1042 = vmatmul.mubr.f32.gmra.mxu0 %v586
    %v1043 = vpop.f32.mrf.mxu0
    %v1044 = vadd.f32 %v973, %v1043
    %v1045 = vpop.f32.mrf.mxu0
    %v1046 = vadd.f32 %v975, %v1045
    %1047 = vdwg.mxu0
    %1048 = vmatprep.subr.mxu0 %v516
    %1049 = vmatpush1.msra.mxu0 %v515
    %1050 = vmatprep.subr.mxu0 %v514
    %1051 = vmatpush1.msra.mxu0 %v513
    %1052 = vmatprep.subr.mxu0 %v512
    %1053 = vmatpush1.msra.mxu0 %v511
    %1054 = vmatprep.subr.mxu0 %v510
    %1055 = vmatpush1.msra.mxu0 %v509
    %1056 = vmatprep.subr.mxu0 %v508
    %1057 = vmatpush1.msra.mxu0 %v507
    %1058 = vmatprep.subr.mxu0 %v506
    %1059 = vmatpush1.msra.mxu0 %v505
    %1060 = vmatprep.subr.mxu0 %v504
    %1061 = vmatpush1.msra.mxu0 %v503
    %1062 = vmatprep.subr.mxu0 %v502
    %1063 = vmatpush1.msra.mxu0 %v501
    %1064 = vmatprep.subr.mxu0 %v500
    %1065 = vmatpush1.msra.mxu0 %v499
    %1066 = vmatprep.subr.mxu0 %v498
    %1067 = vmatpush1.msra.mxu0 %v497
    %1068 = vmatprep.subr.mxu0 %v496
    %1069 = vmatpush1.msra.mxu0 %v495
    %1070 = vmatprep.subr.mxu0 %v494
    %1071 = vmatpush1.msra.mxu0 %v493
    %1072 = vmatprep.subr.mxu0 %v492
    %1073 = vmatpush1.msra.mxu0 %v491
    %1074 = vmatprep.subr.mxu0 %v490
    %1075 = vmatpush1.msra.mxu0 %v489
    %1076 = vmatprep.subr.mxu0 %v488
    %1077 = vmatpush1.msra.mxu0 %v487
    %1078 = vmatprep.subr.mxu0 %v486
    %1079 = vmatpush1.msra.mxu0 %v485
    %1080 = vmatprep.subr.mxu0 %v548
    %1081 = vmatpush2.msra.mxu0 %v547
    %1082 = vmatprep.subr.mxu0 %v546
    %1083 = vmatpush2.msra.mxu0 %v545
    %1084 = vmatprep.subr.mxu0 %v544
    %1085 = vmatpush2.msra.mxu0 %v543
    %1086 = vmatprep.subr.mxu0 %v542
    %1087 = vmatpush2.msra.mxu0 %v541
    %1088 = vmatprep.subr.mxu0 %v540
    %1089 = vmatpush2.msra.mxu0 %v539
    %1090 = vmatprep.subr.mxu0 %v538
    %1091 = vmatpush2.msra.mxu0 %v537
    %1092 = vmatprep.subr.mxu0 %v536
    %1093 = vmatpush2.msra.mxu0 %v535
    %1094 = vmatprep.subr.mxu0 %v534
    %1095 = vmatpush2.msra.mxu0 %v533
    %1096 = vmatprep.subr.mxu0 %v532
    %1097 = vmatpush2.msra.mxu0 %v531
    %1098 = vmatprep.subr.mxu0 %v530
    %1099 = vmatpush2.msra.mxu0 %v529
    %1100 = vmatprep.subr.mxu0 %v528
    %1101 = vmatpush2.msra.mxu0 %v527
    %1102 = vmatprep.subr.mxu0 %v526
    %1103 = vmatpush2.msra.mxu0 %v525
    %1104 = vmatprep.subr.mxu0 %v524
    %1105 = vmatpush2.msra.mxu0 %v523
    %1106 = vmatprep.subr.mxu0 %v522
    %1107 = vmatpush2.msra.mxu0 %v521
    %1108 = vmatprep.subr.mxu0 %v520
    %1109 = vmatpush2.msra.mxu0 %v519
    %1110 = vmatprep.subr.mxu0 %v518
    %1111 = vmatpush2.msra.mxu0 %v517
    %1112 = vmatprep.mubr.f32.mxu0 %v614
    %1113 = vmatmul.mubr.f32.gmra.mxu0 %v587
    %v1114 = vpop.f32.mrf.mxu0
    %v1115 = vadd.f32 %v1044, %v1114
    %v1116 = vpop.f32.mrf.mxu0
    %v1117 = vadd.f32 %v1046, %v1116
    %1118 = vdwg.mxu0
    %1119 = vmatprep.subr.mxu0 %v580
    %1120 = vmatpush1.msra.mxu0 %v579
    %1121 = vmatprep.subr.mxu0 %v578
    %1122 = vmatpush1.msra.mxu0 %v577
    %1123 = vmatprep.subr.mxu0 %v576
    %1124 = vmatpush1.msra.mxu0 %v575
    %1125 = vmatprep.subr.mxu0 %v574
    %1126 = vmatpush1.msra.mxu0 %v573
    %1127 = vmatprep.subr.mxu0 %v572
    %1128 = vmatpush1.msra.mxu0 %v571
    %1129 = vmatprep.subr.mxu0 %v570
    %1130 = vmatpush1.msra.mxu0 %v569
    %1131 = vmatprep.subr.mxu0 %v568
    %1132 = vmatpush1.msra.mxu0 %v567
    %1133 = vmatprep.subr.mxu0 %v566
    %1134 = vmatpush1.msra.mxu0 %v565
    %1135 = vmatprep.subr.mxu0 %v564
    %1136 = vmatpush1.msra.mxu0 %v563
    %1137 = vmatprep.subr.mxu0 %v562
    %1138 = vmatpush1.msra.mxu0 %v561
    %1139 = vmatprep.subr.mxu0 %v560
    %1140 = vmatpush1.msra.mxu0 %v559
    %1141 = vmatprep.subr.mxu0 %v558
    %1142 = vmatpush1.msra.mxu0 %v557
    %1143 = vmatprep.subr.mxu0 %v556
    %1144 = vmatpush1.msra.mxu0 %v555
    %1145 = vmatprep.subr.mxu0 %v554
    %1146 = vmatpush1.msra.mxu0 %v553
    %1147 = vmatprep.subr.mxu0 %v552
    %1148 = vmatpush1.msra.mxu0 %v551
    %1149 = vmatprep.subr.mxu0 %v550
    %1150 = vmatpush1.msra.mxu0 %v549
    %1151 = vmatprep.subr.mxu0 0.0
    %1152 = vmatpush2.msra.mxu0 0.0
    %1153 = vmatprep.subr.mxu0 0.0
    %1154 = vmatpush2.msra.mxu0 0.0
    %1155 = vmatprep.subr.mxu0 0.0
    %1156 = vmatpush2.msra.mxu0 0.0
    %1157 = vmatprep.subr.mxu0 0.0
    %1158 = vmatpush2.msra.mxu0 0.0
    %1159 = vmatprep.subr.mxu0 0.0
    %1160 = vmatpush2.msra.mxu0 0.0
    %1161 = vmatprep.subr.mxu0 0.0
    %1162 = vmatpush2.msra.mxu0 0.0
    %1163 = vmatprep.subr.mxu0 0.0
    %1164 = vmatpush2.msra.mxu0 0.0
    %1165 = vmatprep.subr.mxu0 0.0
    %1166 = vmatpush2.msra.mxu0 0.0
    %1167 = vmatprep.subr.mxu0 0.0
    %1168 = vmatpush2.msra.mxu0 0.0
    %1169 = vmatprep.subr.mxu0 0.0
    %1170 = vmatpush2.msra.mxu0 0.0
    %1171 = vmatprep.subr.mxu0 0.0
    %1172 = vmatpush2.msra.mxu0 0.0
    %1173 = vmatprep.subr.mxu0 0.0
    %1174 = vmatpush2.msra.mxu0 0.0
    %1175 = vmatprep.subr.mxu0 0.0
    %1176 = vmatpush2.msra.mxu0 0.0
    %1177 = vmatprep.subr.mxu0 0.0
    %1178 = vmatpush2.msra.mxu0 0.0
    %1179 = vmatprep.subr.mxu0 0.0
    %1180 = vmatpush2.msra.mxu0 0.0
    %1181 = vmatprep.subr.mxu0 0.0
    %1182 = vmatpush2.msra.mxu0 0.0
    %1183 = vmatprep.mubr.f32.mxu0 0.0
    %1184 = vmatmul.mubr.f32.gmra.mxu0 %v588
    %v1185 = vpop.f32.mrf.mxu0
    %v1186 = vadd.f32 %v1115, %v1185
    %v1187 = vpop.f32.mrf.mxu0
    %v1188 = vadd.f32 %v1117, %v1187
    %1189 = vdwg.mxu0
    %v1190 = vld [vmem:[#allocation6] sm:$0x77]
    %v1191 = vld [vmem:[#allocation6 + $0x8] sm:$0x77]
    %v1192 = vld [vmem:[#allocation6 + $0x10] sm:$0x77]
    %v1193 = vld [vmem:[#allocation6 + $0x18] sm:$0x77]
    %v1194 = vld [vmem:[#allocation6 + $0x20] sm:$0x77]
    %v1195 = vld [vmem:[#allocation6 + $0x28] sm:$0x77]
    %v1196 = vld [vmem:[#allocation6 + $0x30] sm:$0x77]
    %v1197 = vld [vmem:[#allocation6 + $0x38] sm:$0x7]
    %v1205 = vcombine.high %v1190, %v1190
    %v1206 = vcombine.high %v1191, %v1191
    %v1207 = vcombine.high %v1192, %v1192
    %v1208 = vcombine.high %v1193, %v1193
    %v1209 = vcombine.high %v1194, %v1194
    %v1210 = vcombine.high %v1195, %v1195
    %v1211 = vcombine.high %v1196, %v1196
    %1219 = vmatprep.subr.mxu0 %v132
    %1220 = vmatpush1.msra.mxu0 %v131
    %1221 = vmatprep.subr.mxu0 %v130
    %1222 = vmatpush1.msra.mxu0 %v129
    %1223 = vmatprep.subr.mxu0 %v128
    %1224 = vmatpush1.msra.mxu0 %v127
    %1225 = vmatprep.subr.mxu0 %v126
    %1226 = vmatpush1.msra.mxu0 %v125
    %1227 = vmatprep.subr.mxu0 %v124
    %1228 = vmatpush1.msra.mxu0 %v123
    %1229 = vmatprep.subr.mxu0 %v122
    %1230 = vmatpush1.msra.mxu0 %v121
    %1231 = vmatprep.subr.mxu0 %v120
    %1232 = vmatpush1.msra.mxu0 %v119
    %1233 = vmatprep.subr.mxu0 %v118
    %1234 = vmatpush1.msra.mxu0 %v117
    %1235 = vmatprep.subr.mxu0 %v116
    %1236 = vmatpush1.msra.mxu0 %v115
    %1237 = vmatprep.subr.mxu0 %v114
    %1238 = vmatpush1.msra.mxu0 %v113
    %1239 = vmatprep.subr.mxu0 %v112
    %1240 = vmatpush1.msra.mxu0 %v111
    %1241 = vmatprep.subr.mxu0 %v110
    %1242 = vmatpush1.msra.mxu0 %v109
    %1243 = vmatprep.subr.mxu0 %v108
    %1244 = vmatpush1.msra.mxu0 %v107
    %1245 = vmatprep.subr.mxu0 %v106
    %1246 = vmatpush1.msra.mxu0 %v105
    %1247 = vmatprep.subr.mxu0 %v104
    %1248 = vmatpush1.msra.mxu0 %v103
    %1249 = vmatprep.subr.mxu0 %v102
    %1250 = vmatpush1.msra.mxu0 %v101
    %1251 = vmatprep.subr.mxu0 %v164
    %1252 = vmatpush2.msra.mxu0 %v163
    %1253 = vmatprep.subr.mxu0 %v162
    %1254 = vmatpush2.msra.mxu0 %v161
    %1255 = vmatprep.subr.mxu0 %v160
    %1256 = vmatpush2.msra.mxu0 %v159
    %1257 = vmatprep.subr.mxu0 %v158
    %1258 = vmatpush2.msra.mxu0 %v157
    %1259 = vmatprep.subr.mxu0 %v156
    %1260 = vmatpush2.msra.mxu0 %v155
    %1261 = vmatprep.subr.mxu0 %v154
    %1262 = vmatpush2.msra.mxu0 %v153
    %1263 = vmatprep.subr.mxu0 %v152
    %1264 = vmatpush2.msra.mxu0 %v151
    %1265 = vmatprep.subr.mxu0 %v150
    %1266 = vmatpush2.msra.mxu0 %v149
    %1267 = vmatprep.subr.mxu0 %v148
    %1268 = vmatpush2.msra.mxu0 %v147
    %1269 = vmatprep.subr.mxu0 %v146
    %1270 = vmatpush2.msra.mxu0 %v145
    %1271 = vmatprep.subr.mxu0 %v144
    %1272 = vmatpush2.msra.mxu0 %v143
    %1273 = vmatprep.subr.mxu0 %v142
    %1274 = vmatpush2.msra.mxu0 %v141
    %1275 = vmatprep.subr.mxu0 %v140
    %1276 = vmatpush2.msra.mxu0 %v139
    %1277 = vmatprep.subr.mxu0 %v138
    %1278 = vmatpush2.msra.mxu0 %v137
    %1279 = vmatprep.subr.mxu0 %v136
    %1280 = vmatpush2.msra.mxu0 %v135
    %1281 = vmatprep.subr.mxu0 %v134
    %1282 = vmatpush2.msra.mxu0 %v133
    %1283 = vmatprep.mubr.f32.mxu0 %v1205
    %1284 = vmatmul.mubr.f32.gmra.mxu0 %v1190
    %v1285 = vpop.f32.mrf.mxu0
    %v1286 = vadd.f32 0.0, %v1285
    %v1287 = vpop.f32.mrf.mxu0
    %v1288 = vadd.f32 0.0, %v1287
    %1289 = vdwg.mxu0
    %1290 = vmatprep.subr.mxu0 %v196
    %1291 = vmatpush1.msra.mxu0 %v195
    %1292 = vmatprep.subr.mxu0 %v194
    %1293 = vmatpush1.msra.mxu0 %v193
    %1294 = vmatprep.subr.mxu0 %v192
    %1295 = vmatpush1.msra.mxu0 %v191
    %1296 = vmatprep.subr.mxu0 %v190
    %1297 = vmatpush1.msra.mxu0 %v189
    %1298 = vmatprep.subr.mxu0 %v188
    %1299 = vmatpush1.msra.mxu0 %v187
    %1300 = vmatprep.subr.mxu0 %v186
    %1301 = vmatpush1.msra.mxu0 %v185
    %1302 = vmatprep.subr.mxu0 %v184
    %1303 = vmatpush1.msra.mxu0 %v183
    %1304 = vmatprep.subr.mxu0 %v182
    %1305 = vmatpush1.msra.mxu0 %v181
    %1306 = vmatprep.subr.mxu0 %v180
    %1307 = vmatpush1.msra.mxu0 %v179
    %1308 = vmatprep.subr.mxu0 %v178
    %1309 = vmatpush1.msra.mxu0 %v177
    %1310 = vmatprep.subr.mxu0 %v176
    %1311 = vmatpush1.msra.mxu0 %v175
    %1312 = vmatprep.subr.mxu0 %v174
    %1313 = vmatpush1.msra.mxu0 %v173
    %1314 = vmatprep.subr.mxu0 %v172
    %1315 = vmatpush1.msra.mxu0 %v171
    %1316 = vmatprep.subr.mxu0 %v170
    %1317 = vmatpush1.msra.mxu0 %v169
    %1318 = vmatprep.subr.mxu0 %v168
    %1319 = vmatpush1.msra.mxu0 %v167
    %1320 = vmatprep.subr.mxu0 %v166
    %1321 = vmatpush1.msra.mxu0 %v165
    %1322 = vmatprep.subr.mxu0 %v228
    %1323 = vmatpush2.msra.mxu0 %v227
    %1324 = vmatprep.subr.mxu0 %v226
    %1325 = vmatpush2.msra.mxu0 %v225
    %1326 = vmatprep.subr.mxu0 %v224
    %1327 = vmatpush2.msra.mxu0 %v223
    %1328 = vmatprep.subr.mxu0 %v222
    %1329 = vmatpush2.msra.mxu0 %v221
    %1330 = vmatprep.subr.mxu0 %v220
    %1331 = vmatpush2.msra.mxu0 %v219
    %1332 = vmatprep.subr.mxu0 %v218
    %1333 = vmatpush2.msra.mxu0 %v217
    %1334 = vmatprep.subr.mxu0 %v216
    %1335 = vmatpush2.msra.mxu0 %v215
    %1336 = vmatprep.subr.mxu0 %v214
    %1337 = vmatpush2.msra.mxu0 %v213
    %1338 = vmatprep.subr.mxu0 %v212
    %1339 = vmatpush2.msra.mxu0 %v211
    %1340 = vmatprep.subr.mxu0 %v210
    %1341 = vmatpush2.msra.mxu0 %v209
    %1342 = vmatprep.subr.mxu0 %v208
    %1343 = vmatpush2.msra.mxu0 %v207
    %1344 = vmatprep.subr.mxu0 %v206
    %1345 = vmatpush2.msra.mxu0 %v205
    %1346 = vmatprep.subr.mxu0 %v204
    %1347 = vmatpush2.msra.mxu0 %v203
    %1348 = vmatprep.subr.mxu0 %v202
    %1349 = vmatpush2.msra.mxu0 %v201
    %1350 = vmatprep.subr.mxu0 %v200
    %1351 = vmatpush2.msra.mxu0 %v199
    %1352 = vmatprep.subr.mxu0 %v198
    %1353 = vmatpush2.msra.mxu0 %v197
    %1354 = vmatprep.mubr.f32.mxu0 %v1206
    %1355 = vmatmul.mubr.f32.gmra.mxu0 %v1191
    %v1356 = vpop.f32.mrf.mxu0
    %v1357 = vadd.f32 %v1286, %v1356
    %v1358 = vpop.f32.mrf.mxu0
    %v1359 = vadd.f32 %v1288, %v1358
    %1360 = vdwg.mxu0
    %1361 = vmatprep.subr.mxu0 %v260
    %1362 = vmatpush1.msra.mxu0 %v259
    %1363 = vmatprep.subr.mxu0 %v258
    %1364 = vmatpush1.msra.mxu0 %v257
    %1365 = vmatprep.subr.mxu0 %v256
    %1366 = vmatpush1.msra.mxu0 %v255
    %1367 = vmatprep.subr.mxu0 %v254
    %1368 = vmatpush1.msra.mxu0 %v253
    %1369 = vmatprep.subr.mxu0 %v252
    %1370 = vmatpush1.msra.mxu0 %v251
    %1371 = vmatprep.subr.mxu0 %v250
    %1372 = vmatpush1.msra.mxu0 %v249
    %1373 = vmatprep.subr.mxu0 %v248
    %1374 = vmatpush1.msra.mxu0 %v247
    %1375 = vmatprep.subr.mxu0 %v246
    %1376 = vmatpush1.msra.mxu0 %v245
    %1377 = vmatprep.subr.mxu0 %v244
    %1378 = vmatpush1.msra.mxu0 %v243
    %1379 = vmatprep.subr.mxu0 %v242
    %1380 = vmatpush1.msra.mxu0 %v241
    %1381 = vmatprep.subr.mxu0 %v240
    %1382 = vmatpush1.msra.mxu0 %v239
    %1383 = vmatprep.subr.mxu0 %v238
    %1384 = vmatpush1.msra.mxu0 %v237
    %1385 = vmatprep.subr.mxu0 %v236
    %1386 = vmatpush1.msra.mxu0 %v235
    %1387 = vmatprep.subr.mxu0 %v234
    %1388 = vmatpush1.msra.mxu0 %v233
    %1389 = vmatprep.subr.mxu0 %v232
    %1390 = vmatpush1.msra.mxu0 %v231
    %1391 = vmatprep.subr.mxu0 %v230
    %1392 = vmatpush1.msra.mxu0 %v229
    %1393 = vmatprep.subr.mxu0 %v292
    %1394 = vmatpush2.msra.mxu0 %v291
    %1395 = vmatprep.subr.mxu0 %v290
    %1396 = vmatpush2.msra.mxu0 %v289
    %1397 = vmatprep.subr.mxu0 %v288
    %1398 = vmatpush2.msra.mxu0 %v287
    %1399 = vmatprep.subr.mxu0 %v286
    %1400 = vmatpush2.msra.mxu0 %v285
    %1401 = vmatprep.subr.mxu0 %v284
    %1402 = vmatpush2.msra.mxu0 %v283
    %1403 = vmatprep.subr.mxu0 %v282
    %1404 = vmatpush2.msra.mxu0 %v281
    %1405 = vmatprep.subr.mxu0 %v280
    %1406 = vmatpush2.msra.mxu0 %v279
    %1407 = vmatprep.subr.mxu0 %v278
    %1408 = vmatpush2.msra.mxu0 %v277
    %1409 = vmatprep.subr.mxu0 %v276
    %1410 = vmatpush2.msra.mxu0 %v275
    %1411 = vmatprep.subr.mxu0 %v274
    %1412 = vmatpush2.msra.mxu0 %v273
    %1413 = vmatprep.subr.mxu0 %v272
    %1414 = vmatpush2.msra.mxu0 %v271
    %1415 = vmatprep.subr.mxu0 %v270
    %1416 = vmatpush2.msra.mxu0 %v269
    %1417 = vmatprep.subr.mxu0 %v268
    %1418 = vmatpush2.msra.mxu0 %v267
    %1419 = vmatprep.subr.mxu0 %v266
    %1420 = vmatpush2.msra.mxu0 %v265
    %1421 = vmatprep.subr.mxu0 %v264
    %1422 = vmatpush2.msra.mxu0 %v263
    %1423 = vmatprep.subr.mxu0 %v262
    %1424 = vmatpush2.msra.mxu0 %v261
    %1425 = vmatprep.mubr.f32.mxu0 %v1207
    %1426 = vmatmul.mubr.f32.gmra.mxu0 %v1192
    %v1427 = vpop.f32.mrf.mxu0
    %v1428 = vadd.f32 %v1357, %v1427
    %v1429 = vpop.f32.mrf.mxu0
    %v1430 = vadd.f32 %v1359, %v1429
    %1431 = vdwg.mxu0
    %1432 = vmatprep.subr.mxu0 %v324
    %1433 = vmatpush1.msra.mxu0 %v323
    %1434 = vmatprep.subr.mxu0 %v322
    %1435 = vmatpush1.msra.mxu0 %v321
    %1436 = vmatprep.subr.mxu0 %v320
    %1437 = vmatpush1.msra.mxu0 %v319
    %1438 = vmatprep.subr.mxu0 %v318
    %1439 = vmatpush1.msra.mxu0 %v317
    %1440 = vmatprep.subr.mxu0 %v316
    %1441 = vmatpush1.msra.mxu0 %v315
    %1442 = vmatprep.subr.mxu0 %v314
    %1443 = vmatpush1.msra.mxu0 %v313
    %1444 = vmatprep.subr.mxu0 %v312
    %1445 = vmatpush1.msra.mxu0 %v311
    %1446 = vmatprep.subr.mxu0 %v310
    %1447 = vmatpush1.msra.mxu0 %v309
    %1448 = vmatprep.subr.mxu0 %v308
    %1449 = vmatpush1.msra.mxu0 %v307
    %1450 = vmatprep.subr.mxu0 %v306
    %1451 = vmatpush1.msra.mxu0 %v305
    %1452 = vmatprep.subr.mxu0 %v304
    %1453 = vmatpush1.msra.mxu0 %v303
    %1454 = vmatprep.subr.mxu0 %v302
    %1455 = vmatpush1.msra.mxu0 %v301
    %1456 = vmatprep.subr.mxu0 %v300
    %1457 = vmatpush1.msra.mxu0 %v299
    %1458 = vmatprep.subr.mxu0 %v298
    %1459 = vmatpush1.msra.mxu0 %v297
    %1460 = vmatprep.subr.mxu0 %v296
    %1461 = vmatpush1.msra.mxu0 %v295
    %1462 = vmatprep.subr.mxu0 %v294
    %1463 = vmatpush1.msra.mxu0 %v293
    %1464 = vmatprep.subr.mxu0 %v356
    %1465 = vmatpush2.msra.mxu0 %v355
    %1466 = vmatprep.subr.mxu0 %v354
    %1467 = vmatpush2.msra.mxu0 %v353
    %1468 = vmatprep.subr.mxu0 %v352
    %1469 = vmatpush2.msra.mxu0 %v351
    %1470 = vmatprep.subr.mxu0 %v350
    %1471 = vmatpush2.msra.mxu0 %v349
    %1472 = vmatprep.subr.mxu0 %v348
    %1473 = vmatpush2.msra.mxu0 %v347
    %1474 = vmatprep.subr.mxu0 %v346
    %1475 = vmatpush2.msra.mxu0 %v345
    %1476 = vmatprep.subr.mxu0 %v344
    %1477 = vmatpush2.msra.mxu0 %v343
    %1478 = vmatprep.subr.mxu0 %v342
    %1479 = vmatpush2.msra.mxu0 %v341
    %1480 = vmatprep.subr.mxu0 %v340
    %1481 = vmatpush2.msra.mxu0 %v339
    %1482 = vmatprep.subr.mxu0 %v338
    %1483 = vmatpush2.msra.mxu0 %v337
    %1484 = vmatprep.subr.mxu0 %v336
    %1485 = vmatpush2.msra.mxu0 %v335
    %1486 = vmatprep.subr.mxu0 %v334
    %1487 = vmatpush2.msra.mxu0 %v333
    %1488 = vmatprep.subr.mxu0 %v332
    %1489 = vmatpush2.msra.mxu0 %v331
    %1490 = vmatprep.subr.mxu0 %v330
    %1491 = vmatpush2.msra.mxu0 %v329
    %1492 = vmatprep.subr.mxu0 %v328
    %1493 = vmatpush2.msra.mxu0 %v327
    %1494 = vmatprep.subr.mxu0 %v326
    %1495 = vmatpush2.msra.mxu0 %v325
    %1496 = vmatprep.mubr.f32.mxu0 %v1208
    %1497 = vmatmul.mubr.f32.gmra.mxu0 %v1193
    %v1498 = vpop.f32.mrf.mxu0
    %v1499 = vadd.f32 %v1428, %v1498
    %v1500 = vpop.f32.mrf.mxu0
    %v1501 = vadd.f32 %v1430, %v1500
    %1502 = vdwg.mxu0
    %1503 = vmatprep.subr.mxu0 %v388
    %1504 = vmatpush1.msra.mxu0 %v387
    %1505 = vmatprep.subr.mxu0 %v386
    %1506 = vmatpush1.msra.mxu0 %v385
    %1507 = vmatprep.subr.mxu0 %v384
    %1508 = vmatpush1.msra.mxu0 %v383
    %1509 = vmatprep.subr.mxu0 %v382
    %1510 = vmatpush1.msra.mxu0 %v381
    %1511 = vmatprep.subr.mxu0 %v380
    %1512 = vmatpush1.msra.mxu0 %v379
    %1513 = vmatprep.subr.mxu0 %v378
    %1514 = vmatpush1.msra.mxu0 %v377
    %1515 = vmatprep.subr.mxu0 %v376
    %1516 = vmatpush1.msra.mxu0 %v375
    %1517 = vmatprep.subr.mxu0 %v374
    %1518 = vmatpush1.msra.mxu0 %v373
    %1519 = vmatprep.subr.mxu0 %v372
    %1520 = vmatpush1.msra.mxu0 %v371
    %1521 = vmatprep.subr.mxu0 %v370
    %1522 = vmatpush1.msra.mxu0 %v369
    %1523 = vmatprep.subr.mxu0 %v368
    %1524 = vmatpush1.msra.mxu0 %v367
    %1525 = vmatprep.subr.mxu0 %v366
    %1526 = vmatpush1.msra.mxu0 %v365
    %1527 = vmatprep.subr.mxu0 %v364
    %1528 = vmatpush1.msra.mxu0 %v363
    %1529 = vmatprep.subr.mxu0 %v362
    %1530 = vmatpush1.msra.mxu0 %v361
    %1531 = vmatprep.subr.mxu0 %v360
    %1532 = vmatpush1.msra.mxu0 %v359
    %1533 = vmatprep.subr.mxu0 %v358
    %1534 = vmatpush1.msra.mxu0 %v357
    %1535 = vmatprep.subr.mxu0 %v420
    %1536 = vmatpush2.msra.mxu0 %v419
    %1537 = vmatprep.subr.mxu0 %v418
    %1538 = vmatpush2.msra.mxu0 %v417
    %1539 = vmatprep.subr.mxu0 %v416
    %1540 = vmatpush2.msra.mxu0 %v415
    %1541 = vmatprep.subr.mxu0 %v414
    %1542 = vmatpush2.msra.mxu0 %v413
    %1543 = vmatprep.subr.mxu0 %v412
    %1544 = vmatpush2.msra.mxu0 %v411
    %1545 = vmatprep.subr.mxu0 %v410
    %1546 = vmatpush2.msra.mxu0 %v409
    %1547 = vmatprep.subr.mxu0 %v408
    %1548 = vmatpush2.msra.mxu0 %v407
    %1549 = vmatprep.subr.mxu0 %v406
    %1550 = vmatpush2.msra.mxu0 %v405
    %1551 = vmatprep.subr.mxu0 %v404
    %1552 = vmatpush2.msra.mxu0 %v403
    %1553 = vmatprep.subr.mxu0 %v402
    %1554 = vmatpush2.msra.mxu0 %v401
    %1555 = vmatprep.subr.mxu0 %v400
    %1556 = vmatpush2.msra.mxu0 %v399
    %1557 = vmatprep.subr.mxu0 %v398
    %1558 = vmatpush2.msra.mxu0 %v397
    %1559 = vmatprep.subr.mxu0 %v396
    %1560 = vmatpush2.msra.mxu0 %v395
    %1561 = vmatprep.subr.mxu0 %v394
    %1562 = vmatpush2.msra.mxu0 %v393
    %1563 = vmatprep.subr.mxu0 %v392
    %1564 = vmatpush2.msra.mxu0 %v391
    %1565 = vmatprep.subr.mxu0 %v390
    %1566 = vmatpush2.msra.mxu0 %v389
    %1567 = vmatprep.mubr.f32.mxu0 %v1209
    %1568 = vmatmul.mubr.f32.gmra.mxu0 %v1194
    %v1569 = vpop.f32.mrf.mxu0
    %v1570 = vadd.f32 %v1499, %v1569
    %v1571 = vpop.f32.mrf.mxu0
    %v1572 = vadd.f32 %v1501, %v1571
    %1573 = vdwg.mxu0
    %1574 = vmatprep.subr.mxu0 %v452
    %1575 = vmatpush1.msra.mxu0 %v451
    %1576 = vmatprep.subr.mxu0 %v450
    %1577 = vmatpush1.msra.mxu0 %v449
    %1578 = vmatprep.subr.mxu0 %v448
    %1579 = vmatpush1.msra.mxu0 %v447
    %1580 = vmatprep.subr.mxu0 %v446
    %1581 = vmatpush1.msra.mxu0 %v445
    %1582 = vmatprep.subr.mxu0 %v444
    %1583 = vmatpush1.msra.mxu0 %v443
    %1584 = vmatprep.subr.mxu0 %v442
    %1585 = vmatpush1.msra.mxu0 %v441
    %1586 = vmatprep.subr.mxu0 %v440
    %1587 = vmatpush1.msra.mxu0 %v439
    %1588 = vmatprep.subr.mxu0 %v438
    %1589 = vmatpush1.msra.mxu0 %v437
    %1590 = vmatprep.subr.mxu0 %v436
    %1591 = vmatpush1.msra.mxu0 %v435
    %1592 = vmatprep.subr.mxu0 %v434
    %1593 = vmatpush1.msra.mxu0 %v433
    %1594 = vmatprep.subr.mxu0 %v432
    %1595 = vmatpush1.msra.mxu0 %v431
    %1596 = vmatprep.subr.mxu0 %v430
    %1597 = vmatpush1.msra.mxu0 %v429
    %1598 = vmatprep.subr.mxu0 %v428
    %1599 = vmatpush1.msra.mxu0 %v427
    %1600 = vmatprep.subr.mxu0 %v426
    %1601 = vmatpush1.msra.mxu0 %v425
    %1602 = vmatprep.subr.mxu0 %v424
    %1603 = vmatpush1.msra.mxu0 %v423
    %1604 = vmatprep.subr.mxu0 %v422
    %1605 = vmatpush1.msra.mxu0 %v421
    %1606 = vmatprep.subr.mxu0 %v484
    %1607 = vmatpush2.msra.mxu0 %v483
    %1608 = vmatprep.subr.mxu0 %v482
    %1609 = vmatpush2.msra.mxu0 %v481
    %1610 = vmatprep.subr.mxu0 %v480
    %1611 = vmatpush2.msra.mxu0 %v479
    %1612 = vmatprep.subr.mxu0 %v478
    %1613 = vmatpush2.msra.mxu0 %v477
    %1614 = vmatprep.subr.mxu0 %v476
    %1615 = vmatpush2.msra.mxu0 %v475
    %1616 = vmatprep.subr.mxu0 %v474
    %1617 = vmatpush2.msra.mxu0 %v473
    %1618 = vmatprep.subr.mxu0 %v472
    %1619 = vmatpush2.msra.mxu0 %v471
    %1620 = vmatprep.subr.mxu0 %v470
    %1621 = vmatpush2.msra.mxu0 %v469
    %1622 = vmatprep.subr.mxu0 %v468
    %1623 = vmatpush2.msra.mxu0 %v467
    %1624 = vmatprep.subr.mxu0 %v466
    %1625 = vmatpush2.msra.mxu0 %v465
    %1626 = vmatprep.subr.mxu0 %v464
    %1627 = vmatpush2.msra.mxu0 %v463
    %1628 = vmatprep.subr.mxu0 %v462
    %1629 = vmatpush2.msra.mxu0 %v461
    %1630 = vmatprep.subr.mxu0 %v460
    %1631 = vmatpush2.msra.mxu0 %v459
    %1632 = vmatprep.subr.mxu0 %v458
    %1633 = vmatpush2.msra.mxu0 %v457
    %1634 = vmatprep.subr.mxu0 %v456
    %1635 = vmatpush2.msra.mxu0 %v455
    %1636 = vmatprep.subr.mxu0 %v454
    %1637 = vmatpush2.msra.mxu0 %v453
    %1638 = vmatprep.mubr.f32.mxu0 %v1210
    %1639 = vmatmul.mubr.f32.gmra.mxu0 %v1195
    %v1640 = vpop.f32.mrf.mxu0
    %v1641 = vadd.f32 %v1570, %v1640
    %v1642 = vpop.f32.mrf.mxu0
    %v1643 = vadd.f32 %v1572, %v1642
    %1644 = vdwg.mxu0
    %1645 = vmatprep.subr.mxu0 %v516
    %1646 = vmatpush1.msra.mxu0 %v515
    %1647 = vmatprep.subr.mxu0 %v514
    %1648 = vmatpush1.msra.mxu0 %v513
    %1649 = vmatprep.subr.mxu0 %v512
    %1650 = vmatpush1.msra.mxu0 %v511
    %1651 = vmatprep.subr.mxu0 %v510
    %1652 = vmatpush1.msra.mxu0 %v509
    %1653 = vmatprep.subr.mxu0 %v508
    %1654 = vmatpush1.msra.mxu0 %v507
    %1655 = vmatprep.subr.mxu0 %v506
    %1656 = vmatpush1.msra.mxu0 %v505
    %1657 = vmatprep.subr.mxu0 %v504
    %1658 = vmatpush1.msra.mxu0 %v503
    %1659 = vmatprep.subr.mxu0 %v502
    %1660 = vmatpush1.msra.mxu0 %v501
    %1661 = vmatprep.subr.mxu0 %v500
    %1662 = vmatpush1.msra.mxu0 %v499
    %1663 = vmatprep.subr.mxu0 %v498
    %1664 = vmatpush1.msra.mxu0 %v497
    %1665 = vmatprep.subr.mxu0 %v496
    %1666 = vmatpush1.msra.mxu0 %v495
    %1667 = vmatprep.subr.mxu0 %v494
    %1668 = vmatpush1.msra.mxu0 %v493
    %1669 = vmatprep.subr.mxu0 %v492
    %1670 = vmatpush1.msra.mxu0 %v491
    %1671 = vmatprep.subr.mxu0 %v490
    %1672 = vmatpush1.msra.mxu0 %v489
    %1673 = vmatprep.subr.mxu0 %v488
    %1674 = vmatpush1.msra.mxu0 %v487
    %1675 = vmatprep.subr.mxu0 %v486
    %1676 = vmatpush1.msra.mxu0 %v485
    %1677 = vmatprep.subr.mxu0 %v548
    %1678 = vmatpush2.msra.mxu0 %v547
    %1679 = vmatprep.subr.mxu0 %v546
    %1680 = vmatpush2.msra.mxu0 %v545
    %1681 = vmatprep.subr.mxu0 %v544
    %1682 = vmatpush2.msra.mxu0 %v543
    %1683 = vmatprep.subr.mxu0 %v542
    %1684 = vmatpush2.msra.mxu0 %v541
    %1685 = vmatprep.subr.mxu0 %v540
    %1686 = vmatpush2.msra.mxu0 %v539
    %1687 = vmatprep.subr.mxu0 %v538
    %1688 = vmatpush2.msra.mxu0 %v537
    %1689 = vmatprep.subr.mxu0 %v536
    %1690 = vmatpush2.msra.mxu0 %v535
    %1691 = vmatprep.subr.mxu0 %v534
    %1692 = vmatpush2.msra.mxu0 %v533
    %1693 = vmatprep.subr.mxu0 %v532
    %1694 = vmatpush2.msra.mxu0 %v531
    %1695 = vmatprep.subr.mxu0 %v530
    %1696 = vmatpush2.msra.mxu0 %v529
    %1697 = vmatprep.subr.mxu0 %v528
    %1698 = vmatpush2.msra.mxu0 %v527
    %1699 = vmatprep.subr.mxu0 %v526
    %1700 = vmatpush2.msra.mxu0 %v525
    %1701 = vmatprep.subr.mxu0 %v524
    %1702 = vmatpush2.msra.mxu0 %v523
    %1703 = vmatprep.subr.mxu0 %v522
    %1704 = vmatpush2.msra.mxu0 %v521
    %1705 = vmatprep.subr.mxu0 %v520
    %1706 = vmatpush2.msra.mxu0 %v519
    %1707 = vmatprep.subr.mxu0 %v518
    %1708 = vmatpush2.msra.mxu0 %v517
    %1709 = vmatprep.mubr.f32.mxu0 %v1211
    %1710 = vmatmul.mubr.f32.gmra.mxu0 %v1196
    %v1711 = vpop.f32.mrf.mxu0
    %v1712 = vadd.f32 %v1641, %v1711
    %v1713 = vpop.f32.mrf.mxu0
    %v1714 = vadd.f32 %v1643, %v1713
    %1715 = vdwg.mxu0
    %1716 = vmatprep.subr.mxu0 %v580
    %1717 = vmatpush1.msra.mxu0 %v579
    %1718 = vmatprep.subr.mxu0 %v578
    %1719 = vmatpush1.msra.mxu0 %v577
    %1720 = vmatprep.subr.mxu0 %v576
    %1721 = vmatpush1.msra.mxu0 %v575
    %1722 = vmatprep.subr.mxu0 %v574
    %1723 = vmatpush1.msra.mxu0 %v573
    %1724 = vmatprep.subr.mxu0 %v572
    %1725 = vmatpush1.msra.mxu0 %v571
    %1726 = vmatprep.subr.mxu0 %v570
    %1727 = vmatpush1.msra.mxu0 %v569
    %1728 = vmatprep.subr.mxu0 %v568
    %1729 = vmatpush1.msra.mxu0 %v567
    %1730 = vmatprep.subr.mxu0 %v566
    %1731 = vmatpush1.msra.mxu0 %v565
    %1732 = vmatprep.subr.mxu0 %v564
    %1733 = vmatpush1.msra.mxu0 %v563
    %1734 = vmatprep.subr.mxu0 %v562
    %1735 = vmatpush1.msra.mxu0 %v561
    %1736 = vmatprep.subr.mxu0 %v560
    %1737 = vmatpush1.msra.mxu0 %v559
    %1738 = vmatprep.subr.mxu0 %v558
    %1739 = vmatpush1.msra.mxu0 %v557
    %1740 = vmatprep.subr.mxu0 %v556
    %1741 = vmatpush1.msra.mxu0 %v555
    %1742 = vmatprep.subr.mxu0 %v554
    %1743 = vmatpush1.msra.mxu0 %v553
    %1744 = vmatprep.subr.mxu0 %v552
    %1745 = vmatpush1.msra.mxu0 %v551
    %1746 = vmatprep.subr.mxu0 %v550
    %1747 = vmatpush1.msra.mxu0 %v549
    %1748 = vmatprep.subr.mxu0 0.0
    %1749 = vmatpush2.msra.mxu0 0.0
    %1750 = vmatprep.subr.mxu0 0.0
    %1751 = vmatpush2.msra.mxu0 0.0
    %1752 = vmatprep.subr.mxu0 0.0
    %1753 = vmatpush2.msra.mxu0 0.0
    %1754 = vmatprep.subr.mxu0 0.0
    %1755 = vmatpush2.msra.mxu0 0.0
    %1756 = vmatprep.subr.mxu0 0.0
    %1757 = vmatpush2.msra.mxu0 0.0
    %1758 = vmatprep.subr.mxu0 0.0
    %1759 = vmatpush2.msra.mxu0 0.0
    %1760 = vmatprep.subr.mxu0 0.0
    %1761 = vmatpush2.msra.mxu0 0.0
    %1762 = vmatprep.subr.mxu0 0.0
    %1763 = vmatpush2.msra.mxu0 0.0
    %1764 = vmatprep.subr.mxu0 0.0
    %1765 = vmatpush2.msra.mxu0 0.0
    %1766 = vmatprep.subr.mxu0 0.0
    %1767 = vmatpush2.msra.mxu0 0.0
    %1768 = vmatprep.subr.mxu0 0.0
    %1769 = vmatpush2.msra.mxu0 0.0
    %1770 = vmatprep.subr.mxu0 0.0
    %1771 = vmatpush2.msra.mxu0 0.0
    %1772 = vmatprep.subr.mxu0 0.0
    %1773 = vmatpush2.msra.mxu0 0.0
    %1774 = vmatprep.subr.mxu0 0.0
    %1775 = vmatpush2.msra.mxu0 0.0
    %1776 = vmatprep.subr.mxu0 0.0
    %1777 = vmatpush2.msra.mxu0 0.0
    %1778 = vmatprep.subr.mxu0 0.0
    %1779 = vmatpush2.msra.mxu0 0.0
    %1780 = vmatprep.mubr.f32.mxu0 0.0
    %1781 = vmatmul.mubr.f32.gmra.mxu0 %v1197
    %v1782 = vpop.f32.mrf.mxu0
    %v1783 = vadd.f32 %v1712, %v1782
    %v1784 = vpop.f32.mrf.mxu0
    %v1785 = vadd.f32 %v1714, %v1784
    %1786 = vdwg.mxu0
    %v1787 = vld [vmem:[#allocation11] sm:$0x3]
    %v1788 = vld [vmem:[#allocation2] sm:$0x1]
    %v1789 = vld [vmem:[#allocation12] sm:$0x7]
    %vm1790 = vcmp.gt.f32.partialorder %v1789, 0.5
    %v1791 = vlaneseq
    %v1792 = vshrl.u32 %v1791, 7
    %v1793 = vsub.s32 0, %v1792
    %v1794 = vrot.slane %v1186, %v1793
    %v1795 = vlaneseq
    %v1796 = vshrl.u32 %v1795, 7
    %v1797 = vsub.s32 0, %v1796
    %v1798 = vrot.slane %v1188, %v1797
    %v1799 = vsub.f32 %v1794, %v1783
    %v1800 = vsub.f32 %v1798, %v1785
    %v1801 = vmax.f32 %v1799, 0.0
    %v1802 = vmax.f32 %v1800, 0.0
    %v1804 = vlaneseq
    %v1805 = vshrl.u32 %v1804, 7
    %v1806 = vsub.s32 0, %v1805
    %v1807 = vrot.slane %v1787, %v1806
    %v1808 = vlaneseq
    %v1809 = vshrl.u32 %v1808, 7
    %v1810 = vsub.s32 1, %v1809
    %v1811 = vrot.slane %v1787, %v1810
    %v1814 = vmul.f32 %v1801, %v1807
    %v1815 = vmul.f32 %v1802, %v1811
    %vm1816 = vcmask 1042432
    %v1817 = vsel %vm1816, %v1814, 0.0
    %v1818 = vsel %vm1816, %v1815, 0.0
    %v1819 = vadd.f32 %v1817, %v1818
    %1820 = vadd.xlane.f32.xlu0 %v1819
    %v1821 = vpop.xlane.xlu0 %1820
    %v1823 = vlaneseq
    %v1824 = vshrl.u32 %v1823, 7
    %v1825 = vsub.s32 0, %v1824
    %v1826 = vrot.slane %v1788, %v1825
    %v1828 = vadd.f32 %v1821, %v1826
    %v1829 = vsub.f32 0.0, %v1828
    %v1830 = vsel %vm1790, %v1829, %v1828
    %v1831 = vmax.f32 %v1830, 0.0
    %v1832 = vand.u32 2147483647, %v1830
    %v1833 = vsub.f32 0.0, %v1832
    %v1834 = vmul.f32 %v1833, 1.442695
    %v1835 = vpow.pop %v1834
    %v1836 = vadd.f32 %v1835, 1.0
    %v1837 = vlog2.pop %v1836
    %v1838 = vmul.f32 %v1837, 0.6931472
    %v1839 = vadd.f32 %v1831, %v1838
    %vm1840 = vcmask 2048
    %v1841 = vsel %vm1840, %v1839, 0.0
    %v1842 = vrot.slane %v1841, 4
    %v1843 = vadd.f32 %v1841, %v1842
    %v1844 = vrot.slane %v1843, 2
    %v1845 = vadd.f32 %v1843, %v1844
    %v1846 = vrot.slane %v1845, 1
    %v1847 = vadd.f32 %v1845, %v1846
    %v1848 = vadd.f32 %v1847, 0.0
    %v1849 = vlaneseq
    %v1850 = vshrl.u32 %v1849, 7
    %v1851 = vsub.s32 1, %v1850
    %v1852 = vrot.slane %v1186, %v1851
    %v1853 = vlaneseq
    %v1854 = vshrl.u32 %v1853, 7
    %v1855 = vsub.s32 1, %v1854
    %v1856 = vrot.slane %v1188, %v1855
    %v1857 = vsub.f32 %v1852, %v1783
    %v1858 = vsub.f32 %v1856, %v1785
    %v1859 = vmax.f32 %v1857, 0.0
    %v1860 = vmax.f32 %v1858, 0.0
    %v1861 = vmul.f32 %v1859, %v1807
    %v1862 = vmul.f32 %v1860, %v1811
    %v1863 = vsel %vm1816, %v1861, 0.0
    %v1864 = vsel %vm1816, %v1862, 0.0
    %v1865 = vadd.f32 %v1863, %v1864
    %1866 = vadd.xlane.f32.xlu0 %v1865
    %v1867 = vpop.xlane.xlu0 %1866
    %v1868 = vadd.f32 %v1867, %v1826
    %v1869 = vsub.f32 0.0, %v1868
    %1871 = vrot.lane.b32.xlu0 %v1869, 1
    %v1872 = vpop.permute.xlu0 %1871
    %1875 = vrot.lane.b32.xlu0 %v1868, 1
    %v1876 = vpop.permute.xlu0 %1875
    %v1878 = vsel %vm1790, %v1872, %v1876
    %v1879 = vmax.f32 %v1878, 0.0
    %v1880 = vand.u32 2147483647, %v1878
    %v1881 = vsub.f32 0.0, %v1880
    %v1882 = vmul.f32 %v1881, 1.442695
    %v1883 = vpow.pop %v1882
    %v1884 = vadd.f32 %v1883, 1.0
    %v1885 = vlog2.pop %v1884
    %v1886 = vmul.f32 %v1885, 0.6931472
    %v1887 = vadd.f32 %v1879, %v1886
    %vm1888 = vcmask 10248
    %v1889 = vsel %vm1888, %v1887, 0.0
    %v1890 = vrot.slane %v1889, 4
    %v1891 = vadd.f32 %v1889, %v1890
    %v1892 = vrot.slane %v1891, 2
    %v1893 = vadd.f32 %v1891, %v1892
    %v1894 = vrot.slane %v1893, 1
    %v1895 = vadd.f32 %v1893, %v1894
    %1897 = vrot.lane.b32.xlu0 %v1895, 127
    %v1898 = vpop.permute.xlu0 %1897
    %v1900 = vadd.f32 %v1848, %v1898
    %v1901 = vlaneseq
    %v1902 = vshrl.u32 %v1901, 7
    %v1903 = vsub.s32 2, %v1902
    %v1904 = vrot.slane %v1186, %v1903
    %v1905 = vlaneseq
    %v1906 = vshrl.u32 %v1905, 7
    %v1907 = vsub.s32 2, %v1906
    %v1908 = vrot.slane %v1188, %v1907
    %v1909 = vsub.f32 %v1904, %v1783
    %v1910 = vsub.f32 %v1908, %v1785
    %v1911 = vmax.f32 %v1909, 0.0
    %v1912 = vmax.f32 %v1910, 0.0
    %v1913 = vmul.f32 %v1911, %v1807
    %v1914 = vmul.f32 %v1912, %v1811
    %v1915 = vsel %vm1816, %v1913, 0.0
    %v1916 = vsel %vm1816, %v1914, 0.0
    %v1917 = vadd.f32 %v1915, %v1916
    %1918 = vadd.xlane.f32.xlu0 %v1917
    %v1919 = vpop.xlane.xlu0 %1918
    %v1920 = vadd.f32 %v1919, %v1826
    %v1921 = vsub.f32 0.0, %v1920
    %1923 = vrot.lane.b32.xlu0 %v1921, 2
    %v1924 = vpop.permute.xlu0 %1923
    %1927 = vrot.lane.b32.xlu0 %v1920, 2
    %v1928 = vpop.permute.xlu0 %1927
    %v1930 = vsel %vm1790, %v1924, %v1928
    %v1931 = vmax.f32 %v1930, 0.0
    %v1932 = vand.u32 2147483647, %v1930
    %v1933 = vsub.f32 0.0, %v1932
    %v1934 = vmul.f32 %v1933, 1.442695
    %v1935 = vpow.pop %v1934
    %v1936 = vadd.f32 %v1935, 1.0
    %v1937 = vlog2.pop %v1936
    %v1938 = vmul.f32 %v1937, 0.6931472
    %v1939 = vadd.f32 %v1931, %v1938
    %vm1940 = vcmask 18448
    %v1941 = vsel %vm1940, %v1939, 0.0
    %v1942 = vrot.slane %v1941, 4
    %v1943 = vadd.f32 %v1941, %v1942
    %v1944 = vrot.slane %v1943, 2
    %v1945 = vadd.f32 %v1943, %v1944
    %v1946 = vrot.slane %v1945, 1
    %v1947 = vadd.f32 %v1945, %v1946
    %1949 = vrot.lane.b32.xlu0 %v1947, 126
    %v1950 = vpop.permute.xlu0 %1949
    %v1952 = vadd.f32 %v1900, %v1950
    %v1953 = vlaneseq
    %v1954 = vshrl.u32 %v1953, 7
    %v1955 = vsub.s32 3, %v1954
    %v1956 = vrot.slane %v1186, %v1955
    %v1957 = vlaneseq
    %v1958 = vshrl.u32 %v1957, 7
    %v1959 = vsub.s32 3, %v1958
    %v1960 = vrot.slane %v1188, %v1959
    %v1961 = vsub.f32 %v1956, %v1783
    %v1962 = vsub.f32 %v1960, %v1785
    %v1963 = vmax.f32 %v1961, 0.0
    %v1964 = vmax.f32 %v1962, 0.0
    %v1965 = vmul.f32 %v1963, %v1807
    %v1966 = vmul.f32 %v1964, %v1811
    %v1967 = vsel %vm1816, %v1965, 0.0
    %v1968 = vsel %vm1816, %v1966, 0.0
    %v1969 = vadd.f32 %v1967, %v1968
    %1970 = vadd.xlane.f32.xlu0 %v1969
    %v1971 = vpop.xlane.xlu0 %1970
    %v1972 = vadd.f32 %v1971, %v1826
    %v1973 = vsub.f32 0.0, %v1972
    %1975 = vrot.lane.b32.xlu0 %v1973, 3
    %v1976 = vpop.permute.xlu0 %1975
    %1979 = vrot.lane.b32.xlu0 %v1972, 3
    %v1980 = vpop.permute.xlu0 %1979
    %v1982 = vsel %vm1790, %v1976, %v1980
    %v1983 = vmax.f32 %v1982, 0.0
    %v1984 = vand.u32 2147483647, %v1982
    %v1985 = vsub.f32 0.0, %v1984
    %v1986 = vmul.f32 %v1985, 1.442695
    %v1987 = vpow.pop %v1986
    %v1988 = vadd.f32 %v1987, 1.0
    %v1989 = vlog2.pop %v1988
    %v1990 = vmul.f32 %v1989, 0.6931472
    %v1991 = vadd.f32 %v1983, %v1990
    %vm1992 = vcmask 26648
    %v1993 = vsel %vm1992, %v1991, 0.0
    %v1994 = vrot.slane %v1993, 4
    %v1995 = vadd.f32 %v1993, %v1994
    %v1996 = vrot.slane %v1995, 2
    %v1997 = vadd.f32 %v1995, %v1996
    %v1998 = vrot.slane %v1997, 1
    %v1999 = vadd.f32 %v1997, %v1998
    %2001 = vrot.lane.b32.xlu0 %v1999, 125
    %v2002 = vpop.permute.xlu0 %2001
    %v2004 = vadd.f32 %v1952, %v2002
    %v2005 = vmul.f32 %v2004, 0.083333336
    %vm2006 = vcmask 0
    %2007 = vst.msk [vmem:[#allocation14] sm:$0x1] %vm2006, %v2005
    // Predicated region
    $region54: #{tpu_custom_call.1} parent=1 // pred_check
      _
    $region55: #{tpu_custom_call.1} parent=1 // pred_check_branch
      %2009 = sbr.rel (0) target = $region57
    $region56: #{tpu_custom_call.1} parent=1 // pred_region
      %s2011 = ssub.s32 16, 16
      %2012 = vsyncadd [#allocation5], %s2011
      %s2014 = sshll.u32 [#allocation14], 4
      %s2015 = int_to_ptr.vmem [resolvable:$true] %s2014
      %2017 = dma.vmem_to_hbm [thread:$0]  %s2015, 16, %s7, [#allocation5]
    $region57: #{tpu_custom_call.1} parent=1 // pred_fallthru
      _
    // Predicated region
    $region58: #{tpu_custom_call.1} parent=1 // pred_check
      _
    $region59: #{tpu_custom_call.1} parent=1 // pred_check_branch
      %2019 = sbr.rel (0) target = $region61
    $region60: #{tpu_custom_call.1} parent=1 // pred_region
      %2020 = dma.done [#allocation5], 16
    $region61: #{tpu_custom_call.1} parent=1 // pred_fallthru
      _
    %2021 = vsyncpa [#allocation4], 1
    %2022 = vsyncpa [#allocation7], 1
    %2023 = vsyncpa [#allocation10], 1
    %2024 = vsyncpa [#allocation13], 1
    %2025 = vsyncpa [#allocation5], 1

</llo_original>
